<compile_context>
chip_gen: v5e
topology: v5e:2x2
jax: 0.10.0
libtpu: 0.0.40
codegen_flags: <defaults>
</compile_context>

<pallas_src>
import functools

import jax
import jax.numpy as jnp
import numpy as np
from jax import lax
from jax.experimental import pallas as pl
from jax.experimental.pallas import tpu as pltpu


# ------------------------------ helpers ------------------------------------

def _flat_to_grid(p, w):
    """(row, col) of flat index p over a row-major (*, w) grid. int32 in/out.

    Power-of-two w -> single-slot VPU shift/and.  Otherwise f32 multiply by a
    precomputed reciprocal; the +0.5 keeps floor() exact (the true quotient
    lands strictly inside (q, q+1)) for any realistic grid size.
    """
    if w & (w - 1) == 0:                      # power of two (common case)
        shift = w.bit_length() - 1
        gh = p >> shift
        gw = p & (w - 1)
    else:
        inv_w = np.float32(1.0 / w)
        gh = jnp.floor((p.astype(jnp.float32) + 0.5) * inv_w).astype(jnp.int32)
        gw = p - gh * w
    return gh, gw


def _pick_row_tile(L, cap=256):
    """Largest row tile <= cap that divides L (multiple of 8 preferred)."""
    for t in (512, 256, 128, 64, 32, 16, 8):
        if t <= cap and L % t == 0:
            return t
    return L                                   # tiny / odd L: single tile


# ----------------------------- Pallas kernels ------------------------------

def _default_kernel(angle_ref, decay_ref, sin_ref, cos_ref, mask_ref,
                    *, W, tile_r):
    # angle_ref: (D, 1) VMEM.         decay_ref: (num_heads,) SMEM.
    # sin_ref/cos_ref: (1, D, L) block of a per-head (num_heads, D, L) output.
    # mask_ref: (1, tile_r, L) block of the (num_heads, L, L) output.
    h = pl.program_id(0)
    r = pl.program_id(1)
    D = sin_ref.shape[1]
    L = sin_ref.shape[2]

    # Lane-dense RoPE table sin[d, p] = sin(p * angle[d]); recomputed once per
    # head (cheap: D*L elements) so its output block varies over the parallel
    # head axis -> megacore-safe.
    @pl.when(r == 0)
    def _():
        pos = lax.broadcasted_iota(jnp.int32, (D, L), 1).astype(jnp.float32)
        theta = pos * angle_ref[...]          # (D,1) lane-broadcast
        sin_ref[0] = jnp.sin(theta)
        cos_ref[0] = jnp.cos(theta)

    # Manhattan distance tile for flat rows [r*tile_r, (r+1)*tile_r),
    # all in int32 (shift/and), converted to f32 once at the end.
    row_p = lax.broadcasted_iota(jnp.int32, (tile_r, L), 0) + r * tile_r
    col_p = lax.broadcasted_iota(jnp.int32, (tile_r, L), 1)
    gh_r, gw_r = _flat_to_grid(row_p, W)
    gh_c, gw_c = _flat_to_grid(col_p, W)
    dist = (jnp.abs(gh_r - gh_c) + jnp.abs(gw_r - gw_c)).astype(jnp.float32)

    mask_ref[0] = dist * decay_ref[h]


def _chunkwise_kernel(angle_ref, decay_ref, sin_ref, cos_ref, mh_ref, mw_ref,
                      *, H, W):
    # angle_ref: (D, 1) VMEM.  decay_ref: (num_heads, 1) VMEM.
    # sin_ref/cos_ref: (D, L).  mh_ref: (nh, H*H).  mw_ref: (nh, W*W).
    D, L = sin_ref.shape

    pos = lax.broadcasted_iota(jnp.int32, (D, L), 1).astype(jnp.float32)
    theta = pos * angle_ref[...]
    sin_ref[...] = jnp.sin(theta)
    cos_ref[...] = jnp.cos(theta)

    dec = decay_ref[...]                      # (num_heads, 1)

    def flat_1d_dist(l):
        p = lax.broadcasted_iota(jnp.int32, (1, l * l), 1)
        i, j = _flat_to_grid(p, l)
        return jnp.abs(i - j).astype(jnp.float32)   # (1, l*l), lane-dense

    mh_ref[...] = dec * flat_1d_dist(H)       # (nh,1)*(1,HH) -> (nh, HH)
    mw_ref[...] = dec * flat_1d_dist(W)


# ------------------------------ wrappers -----------------------------------

def fused_default(angle, decay, H, W):
    """Default branch: sin/cos tables + full 2-D decay mask, one launch."""
    D = angle.shape[0]
    num_heads = decay.shape[0]
    L = H * W
    tile_r = _pick_row_tile(L)
    n_tiles = L // tile_r

    sin_all, cos_all, mask = pl.pallas_call(
        functools.partial(_default_kernel, W=W, tile_r=tile_r),
        grid=(num_heads, n_tiles),
        in_specs=[
            pl.BlockSpec((D, 1), lambda h, r: (0, 0)),                # angle
            pl.BlockSpec(memory_space=pltpu.MemorySpace.SMEM),        # decay
        ],
        out_specs=(
            pl.BlockSpec((1, D, L), lambda h, r: (h, 0, 0)),          # sin
            pl.BlockSpec((1, D, L), lambda h, r: (h, 0, 0)),          # cos
            pl.BlockSpec((1, tile_r, L), lambda h, r: (h, r, 0)),     # mask
        ),
        out_shape=(
            jax.ShapeDtypeStruct((num_heads, D, L), jnp.float32),
            jax.ShapeDtypeStruct((num_heads, D, L), jnp.float32),
            jax.ShapeDtypeStruct((num_heads, L, L), jnp.float32),
        ),
        compiler_params=pltpu.CompilerParams(
            dimension_semantics=("parallel", "arbitrary")),
    )(angle.reshape(D, 1).astype(jnp.float32), decay.astype(jnp.float32))

    # Layout plumbing back to the module's (H, W, D) convention (XLA-side).
    sin = sin_all[0].T.reshape(H, W, D)
    cos = cos_all[0].T.reshape(H, W, D)
    return sin, cos, mask


def fused_chunkwise(angle, decay, H, W):
    """Chunkwise branch: sin/cos tables + 1-D decay masks, one launch."""
    D = angle.shape[0]
    num_heads = decay.shape[0]
    L = H * W

    sin_t, cos_t, mh_flat, mw_flat = pl.pallas_call(
        functools.partial(_chunkwise_kernel, H=H, W=W),
        out_shape=(
            jax.ShapeDtypeStruct((D, L), jnp.float32),
            jax.ShapeDtypeStruct((D, L), jnp.float32),
            jax.ShapeDtypeStruct((num_heads, H * H), jnp.float32),
            jax.ShapeDtypeStruct((num_heads, W * W), jnp.float32),
        ),
        in_specs=[
            pl.BlockSpec(memory_space=pltpu.MemorySpace.VMEM),
            pl.BlockSpec(memory_space=pltpu.MemorySpace.VMEM),
        ],
        out_specs=(pl.BlockSpec(memory_space=pltpu.MemorySpace.VMEM),) * 4,
    )(angle.reshape(D, 1).astype(jnp.float32),
      decay.reshape(num_heads, 1).astype(jnp.float32))

    sin = sin_t.T.reshape(H, W, D)
    cos = cos_t.T.reshape(H, W, D)
    mask_h = mh_flat.reshape(num_heads, H, H)
    mask_w = mw_flat.reshape(num_heads, W, W)
    return sin, cos, mask_h, mask_w


# ------------------- module parameter init (deterministic) -----------------

def init_rel_pos_params(embed_dim, num_heads, initial_value, heads_range):
    half = embed_dim // num_heads // 2
    angle = 1.0 / (10000.0 ** jnp.linspace(0.0, 1.0, half))
    angle = jnp.repeat(angle, 2)                       # [a0,a0,a1,a1,...]
    decay = jnp.log(
        1.0 - 2.0 ** (-initial_value
                      - heads_range * jnp.arange(num_heads, dtype=jnp.float32)
                      / num_heads))
    return angle.astype(jnp.float32), decay.astype(jnp.float32)


def retnet_rel_pos_2d_forward(slen, angle, decay,
                              activate_recurrent=False,
                              chunkwise_recurrent=False):
    H, W = slen
    if activate_recurrent:
        # Scalar-length (head_dim,) sin/cos + exp(decay): no kernel hot path.
        theta = angle * (H * W - 1)
        return ((jnp.sin(theta), jnp.cos(theta)), jnp.exp(decay))
    elif chunkwise_recurrent:
        sin, cos, mask_h, mask_w = fused_chunkwise(angle, decay, H, W)
        return ((sin, cos), (mask_h, mask_w))
    else:
        sin, cos, mask = fused_default(angle, decay, H, W)
        return ((sin, cos), mask)


# ----------------------------------- main -----------------------------------

if __name__ == "__main__":
    # Forward takes only spatial sizes (no tensor inputs); key kept for parity.
    key = jax.random.PRNGKey(0)
    del key

    embed_dim, num_heads = 32, 4
    initial_value, heads_range = 1.0, 3.0
    slen = (16, 16)
    H, W = slen
    L = H * W

    angle, decay = init_rel_pos_params(embed_dim, num_heads,
                                       initial_value, heads_range)

    # Default branch (full 2-D decay mask).
    (sin, cos), mask = retnet_rel_pos_2d_forward(slen, angle, decay)
    jax.block_until_ready((sin, cos, mask))

    # Chunkwise branch (1-D decay masks).
    (sin_c, cos_c), (mask_h, mask_w) = retnet_rel_pos_2d_forward(
        slen, angle, decay, chunkwise_recurrent=True)
    jax.block_until_ready((sin_c, cos_c, mask_h, mask_w))

    # Recurrent branch (scalar path; plain JAX).
    (sin_r, cos_r), decay_exp = retnet_rel_pos_2d_forward(
        slen, angle, decay, activate_recurrent=True)
    jax.block_until_ready((sin_r, cos_r, decay_exp))

    # ----- pure-JAX reference check -----
    idx = jnp.arange(L, dtype=jnp.float32)
    sin_ref = jnp.sin(idx[:, None] * angle[None, :]).reshape(H, W, -1)
    cos_ref = jnp.cos(idx[:, None] * angle[None, :]).reshape(H, W, -1)
    gh = (jnp.arange(L) // W).astype(jnp.float32)
    gw = (jnp.arange(L) % W).astype(jnp.float32)
    dist = jnp.abs(gh[:, None] - gh[None, :]) + jnp.abs(gw[:, None] - gw[None, :])
    mask_ref = dist[None, :, :] * decay[:, None, None]
    ih = jnp.arange(H, dtype=jnp.float32)
    mask_h_ref = jnp.abs(ih[:, None] - ih[None, :])[None] * decay[:, None, None]
    iw = jnp.arange(W, dtype=jnp.float32)
    mask_w_ref = jnp.abs(iw[:, None] - iw[None, :])[None] * decay[:, None, None]
    sin_r_ref = jnp.sin(angle * (H * W - 1))
    cos_r_ref = jnp.cos(angle * (H * W - 1))

    np.testing.assert_allclose(np.asarray(sin), np.asarray(sin_ref),
                               rtol=1e-5, atol=1e-5)
    np.testing.assert_allclose(np.asarray(cos), np.asarray(cos_ref),
                               rtol=1e-5, atol=1e-5)
    np.testing.assert_allclose(np.asarray(mask), np.asarray(mask_ref),
                               rtol=1e-5, atol=1e-5)
    np.testing.assert_allclose(np.asarray(sin_c), np.asarray(sin_ref),
                               rtol=1e-5, atol=1e-5)
    np.testing.assert_allclose(np.asarray(cos_c), np.asarray(cos_ref),
                               rtol=1e-5, atol=1e-5)
    np.testing.assert_allclose(np.asarray(mask_h), np.asarray(mask_h_ref),
                               rtol=1e-5, atol=1e-5)
    np.testing.assert_allclose(np.asarray(mask_w), np.asarray(mask_w_ref),
                               rtol=1e-5, atol=1e-5)
    np.testing.assert_allclose(np.asarray(sin_r), np.asarray(sin_r_ref),
                               rtol=1e-5, atol=1e-5)
    np.testing.assert_allclose(np.asarray(cos_r), np.asarray(cos_r_ref),
                               rtol=1e-5, atol=1e-5)
    np.testing.assert_allclose(np.asarray(decay_exp), np.exp(np.asarray(decay)),
                               rtol=1e-5, atol=1e-5)

    assert sin.shape == (H, W, embed_dim // num_heads)
    assert mask.shape == (num_heads, L, L)
    assert mask_h.shape == (num_heads, H, H)
    assert mask_w.shape == (num_heads, W, W)

    print("KERNEL_OK")
</pallas_src>

<mosaic_0001>
module attributes {stable_mosaic.version = 11 : i64} {
  func.func @_default_kernel(%arg0: i32, %arg1: i32, %arg2: memref<8x1xf32, #tpu.memory_space<vmem>>, %arg3: memref<4xf32, #tpu.memory_space<smem>>, %arg4: memref<1x8x256xf32, #tpu.memory_space<vmem>>, %arg5: memref<1x8x256xf32, #tpu.memory_space<vmem>>, %arg6: memref<1x256x256xf32, #tpu.memory_space<vmem>>) attributes {dimension_semantics = [#tpu.dimension_semantics<parallel>, #tpu.dimension_semantics<arbitrary>], iteration_bounds = array<i64: 4, 1>, scalar_prefetch = 0 : i64, scratch_operands = 0 : i64, tpu.core_type = #tpu.core_type<tc>, window_params = [{pipeline_mode = #tpu.pipeline_mode<synchronous>, transform_indices = @transform_0, window_bounds = array<i64: 8, 1>}, {transform_indices = @transform_1, window_bounds = array<i64: 4>}, {transform_indices = @transform_2, window_bounds = array<i64: 1, 8, 256>}, {transform_indices = @transform_3, window_bounds = array<i64: 1, 8, 256>}, {transform_indices = @transform_4, window_bounds = array<i64: 1, 256, 256>}]} {
    %c0_i32 = arith.constant 0 : i32
    %0 = arith.cmpi eq, %arg1, %c0_i32 : i32
    %1 = arith.extui %0 : i1 to i32
    %c0_i32_0 = arith.constant 0 : i32
    %2 = arith.cmpi ne, %1, %c0_i32_0 : i32
    scf.if %2 {
      %29 = tpu.iota {dimensions = array<i32: 1>} : vector<8x256xi32>
      %30 = arith.sitofp %29 : vector<8x256xi32> to vector<8x256xf32>
      %c0_5 = arith.constant 0 : index
      %c0_6 = arith.constant 0 : index
      %31 = vector.load %arg2[%c0_5, %c0_6] : memref<8x1xf32, #tpu.memory_space<vmem>>, vector<8x1xf32>
      %32 = vector.broadcast %31 : vector<8x1xf32> to vector<8x256xf32>
      %33 = arith.mulf %30, %32 : vector<8x256xf32>
      %34 = math.sin %33 : vector<8x256xf32>
      %c0_7 = arith.constant 0 : index
      %c0_8 = arith.constant 0 : index
      %c0_9 = arith.constant 0 : index
      %35 = vector.load %arg4[%c0_7, %c0_8, %c0_9] : memref<1x8x256xf32, #tpu.memory_space<vmem>>, vector<1x8x256xf32>
      %36 = vector.shape_cast %35 : vector<1x8x256xf32> to vector<8x256xf32>
      %37 = vector.shape_cast %34 : vector<8x256xf32> to vector<1x8x256xf32>
      tpu.vector_store %arg4[%c0_7, %c0_8, %c0_9], %37 {strides = array<i32>} : memref<1x8x256xf32, #tpu.memory_space<vmem>>, vector<1x8x256xf32>,
      %38 = math.cos %33 : vector<8x256xf32>
      %c0_10 = arith.constant 0 : index
      %c0_11 = arith.constant 0 : index
      %c0_12 = arith.constant 0 : index
      %39 = vector.load %arg5[%c0_10, %c0_11, %c0_12] : memref<1x8x256xf32, #tpu.memory_space<vmem>>, vector<1x8x256xf32>
      %40 = vector.shape_cast %39 : vector<1x8x256xf32> to vector<8x256xf32>
      %41 = vector.shape_cast %38 : vector<8x256xf32> to vector<1x8x256xf32>
      tpu.vector_store %arg5[%c0_10, %c0_11, %c0_12], %41 {strides = array<i32>} : memref<1x8x256xf32, #tpu.memory_space<vmem>>, vector<1x8x256xf32>,
    } else {
    }
    %3 = tpu.iota {dimensions = array<i32: 0>} : vector<256x256xi32>
    %c256_i32 = arith.constant 256 : i32
    %4 = arith.muli %arg1, %c256_i32 : i32
    %5 = vector.broadcast %4 : i32 to vector<256x256xi32>
    %6 = arith.addi %3, %5 : vector<256x256xi32>
    %7 = tpu.iota {dimensions = array<i32: 1>} : vector<256x256xi32>
    %c4_i32 = arith.constant 4 : i32
    %8 = vector.broadcast %c4_i32 : i32 to vector<256x256xi32>
    %9 = arith.shrsi %6, %8 : vector<256x256xi32>
    %c15_i32 = arith.constant 15 : i32
    %10 = vector.broadcast %c15_i32 : i32 to vector<256x256xi32>
    %11 = arith.andi %6, %10 : vector<256x256xi32>
    %c4_i32_1 = arith.constant 4 : i32
    %12 = vector.broadcast %c4_i32_1 : i32 to vector<256x256xi32>
    %13 = arith.shrsi %7, %12 : vector<256x256xi32>
    %c15_i32_2 = arith.constant 15 : i32
    %14 = vector.broadcast %c15_i32_2 : i32 to vector<256x256xi32>
    %15 = arith.andi %7, %14 : vector<256x256xi32>
    %16 = arith.subi %9, %13 : vector<256x256xi32>
    %17 = math.absi %16 : vector<256x256xi32>
    %18 = arith.subi %11, %15 : vector<256x256xi32>
    %19 = math.absi %18 : vector<256x256xi32>
    %20 = arith.addi %17, %19 : vector<256x256xi32>
    %21 = arith.sitofp %20 : vector<256x256xi32> to vector<256x256xf32>
    %22 = arith.index_cast %arg0 : i32 to index
    %23 = memref.load %arg3[%22] : memref<4xf32, #tpu.memory_space<smem>>
    %24 = vector.broadcast %23 : f32 to vector<256x256xf32>
    %25 = arith.mulf %21, %24 : vector<256x256xf32>
    %c0 = arith.constant 0 : index
    %c0_3 = arith.constant 0 : index
    %c0_4 = arith.constant 0 : index
    %26 = vector.load %arg6[%c0, %c0_3, %c0_4] : memref<1x256x256xf32, #tpu.memory_space<vmem>>, vector<1x256x256xf32>
    %27 = vector.shape_cast %26 : vector<1x256x256xf32> to vector<256x256xf32>
    %28 = vector.shape_cast %25 : vector<256x256xf32> to vector<1x256x256xf32>
    tpu.vector_store %arg6[%c0, %c0_3, %c0_4], %28 {strides = array<i32>} : memref<1x256x256xf32, #tpu.memory_space<vmem>>, vector<1x256x256xf32>,
    return
  }
  func.func @transform_0(%arg0: i32, %arg1: i32) -> (i32, i32) {
    %c0_i32 = arith.constant 0 : i32
    %c0_i32_0 = arith.constant 0 : i32
    %c0_i32_1 = arith.constant 0 : i32
    return %c0_i32, %c0_i32_0 : i32, i32
  }
  func.func @transform_1(%arg0: i32, %arg1: i32) -> i32 {
    %c0_i32 = arith.constant 0 : i32
    %c0_i32_0 = arith.constant 0 : i32
    return %c0_i32 : i32
  }
  func.func @transform_2(%arg0: i32, %arg1: i32) -> (i32, i32, i32) {
    %c0_i32 = arith.constant 0 : i32
    %c0_i32_0 = arith.constant 0 : i32
    %c0_i32_1 = arith.constant 0 : i32
    return %arg0, %c0_i32, %c0_i32_0 : i32, i32, i32
  }
  func.func @transform_3(%arg0: i32, %arg1: i32) -> (i32, i32, i32) {
    %c0_i32 = arith.constant 0 : i32
    %c0_i32_0 = arith.constant 0 : i32
    %c0_i32_1 = arith.constant 0 : i32
    return %arg0, %c0_i32, %c0_i32_0 : i32, i32, i32
  }
  func.func @transform_4(%arg0: i32, %arg1: i32) -> (i32, i32, i32) {
    %c0_i32 = arith.constant 0 : i32
    %c0_i32_0 = arith.constant 0 : i32
    return %arg0, %arg1, %c0_i32 : i32, i32, i32
  }
}

</mosaic_0001>

<llo_original>
// kernel: tpu_custom_call.1
$region0: #{tpu_custom_call.1}
  #allocation0 [shape = 'u32[]', space=smem, size = 0x4, offset = 0x4, fixed_abs, tag = 'smem constant byte address 0x4 - core index']
  #allocation1 [shape = 'u32[72,128]{1,0:T(1,128)}', space=vmem, size = 0x9000, scoped, tag = 'internal scratch']
  %s0 = inlined_call_operand.vmem [shape: f32[8,1], index: 0, kind: input, shape index: {}]
  %s1 = inlined_call_operand.vmem [shape: f32[4], index: 1, kind: input, shape index: {}]
  %s2 = inlined_call_operand.hbm [shape: f32[4,8,256], index: 2, kind: output, shape index: {0}]
  %s3 = inlined_call_operand.hbm [shape: f32[4,8,256], index: 3, kind: output, shape index: {1}]
  %s4 = inlined_call_operand.hbm [shape: f32[4,256,256], index: 4, kind: output, shape index: {2}]
  %5 = xla_tuple %s2, %s3, %s4
  %s6 = sld [smem:[#allocation0]]
  $region65: #{tpu_custom_call.1} parent=0
    _
  %s8 = ssub.s32 1, %s6
  %s9 = scalar_select 0, %s8, %s6
  $region1: #{tpu_custom_call.1} parent=0
    #allocation2 [shape = 'u8[512]{0}', space=smem, size = 0x200, scoped, tag = 'input window, operand 1, single buffered']
    #allocation3 [shape = 's32[2]{0}', space=sflag, size = 0x8, scoped, tag = 'scoped memory for tpu_custom_call.1']
    #allocation4 [shape = 's32[2]{0}', space=sflag, size = 0x8, scoped, tag = 'scoped memory for tpu_custom_call.1']
    #allocation5 [shape = 'u8[16384]{0}', space=vmem, size = 0x4000, scoped, tag = 'output window, operand 0']
    #allocation6 [shape = 'u8[16384]{0}', space=vmem, size = 0x4000, scoped, tag = 'output window, operand 1']
    #allocation7 [shape = 's32[2]{0}', space=sflag, size = 0x8, scoped, tag = 'scoped memory for tpu_custom_call.1']
    #allocation8 [shape = 'u8[524288]{0}', space=vmem, size = 0x80000, scoped, tag = 'output window, operand 2']
    %10 = vsyncpa [#allocation4], 0
    %11 = vsyncpa [#allocation3], 0
    %s12 = scalar_lea.sflag [#allocation3], 1
    %13 = vsyncpa %s12, 0
    %14 = vsyncpa [#allocation7], 0
    %s15 = scalar_lea.sflag [#allocation7], 1
    %16 = vsyncpa %s15, 0
    loop: start=0, step=1, limit=6
    $region2: #{tpu_custom_call.1} parent=1 // loop_pre_header
      _
    $region3: #{tpu_custom_call.1} parent=1 // loop_header
      %s18 = sphi 0, %s22
      %p19 = scmp.ge.s32.totalorder %s18, 6
      %s25 = sphi 0, %s37
      %s26 = sphi 0, %s33
      %s27 = sphi 0, %s25
      %s28 = sphi 0, %s26
      %s29 = sphi 0, %s27
      %s30 = sphi 0, %s28
      %s38 = sphi 0, %s38
      %s40 = sphi 0, %s38
      %s41 = sphi 0, %s40
      %s55 = sphi 0, %s41
      %s59 = sphi 0, %s59
      %s61 = sphi 0, %s59
      %s62 = sphi 0, %s61
      %s76 = sphi 0, %s62
      %s82 = sphi 0, %s84
      %s85 = sphi 0, %s82
      %s86 = sphi 0, %s85
      %s102 = sphi 0, %s86
      %s108 = sphi 0, %s110
      %s111 = sphi 0, %s108
      %s112 = sphi 0, %s111
      %s128 = sphi 0, %s112
      %s136 = sphi 0, %s138
      %s139 = sphi 0, %s136
      %s140 = sphi 0, %s139
      %s156 = sphi 0, %s140
    $region4: #{tpu_custom_call.1} parent=1 // loop_header_branch
      %21 = sbr.rel (%p19) target = $region8
    $region5: #{tpu_custom_call.1} parent=1 // loop_body
      %s23 = ssub.s32 %s18, 1
      %s24 = ssub.s32 %s18, 2
      %s31 = sadd.s32 1, %s26
      %p32 = scmp.ge.s32.totalorder %s31, 1
      %s33 = scalar_select %p32, 0, %s31
      %s34 = sadd.s32 1, %s25
      %s35 = scalar_select %p32, %s34, %s25
      %p36 = scmp.ge.s32.totalorder %s35, 4
      %s37 = scalar_select %p36, 0, %s35
      %s39 = sadd.s32 %s38, 1
      %p42 = scmp.eq.s32.totalorder %s18, 3
      %p43 = scmp.ne.s32.totalorder %s38, %s40
      %p44 = scmp.eq.s32.totalorder %s18, 0
      %p45 = por %p43, %p44
      %p46 = scmp.ne.s32.totalorder %s38, %s40
      %p47 = scmp.eq.s32.totalorder %s23, 3
      %p48 = por %p46, %p47
      %p49 = scmp.ne.s32.totalorder %s40, %s41
      %p50 = scmp.eq.s32.totalorder %s23, 0
      %p51 = por %p49, %p50
      %p52 = scmp.ne.s32.totalorder %s40, %s41
      %p53 = scmp.eq.s32.totalorder %s24, 3
      %p54 = por %p52, %p53
      %p56 = scmp.ne.s32.totalorder %s41, %s55
      %p57 = scmp.eq.s32.totalorder %s24, 0
      %p58 = por %p56, %p57
      %s60 = sadd.s32 %s59, 1
      %p63 = scmp.eq.s32.totalorder %s18, 3
      %p64 = scmp.ne.s32.totalorder %s59, %s61
      %p65 = scmp.eq.s32.totalorder %s18, 0
      %p66 = por %p64, %p65
      %p67 = scmp.ne.s32.totalorder %s59, %s61
      %p68 = scmp.eq.s32.totalorder %s23, 3
      %p69 = por %p67, %p68
      %p70 = scmp.ne.s32.totalorder %s61, %s62
      %p71 = scmp.eq.s32.totalorder %s23, 0
      %p72 = por %p70, %p71
      %p73 = scmp.ne.s32.totalorder %s61, %s62
      %p74 = scmp.eq.s32.totalorder %s24, 3
      %p75 = por %p73, %p74
      %p77 = scmp.ne.s32.totalorder %s62, %s76
      %p78 = scmp.eq.s32.totalorder %s24, 0
      %p79 = por %p77, %p78
      %s80 = ssub.s32 %s25, %s37
      %p81 = scmp.eq.s32.totalorder %s80, 0
      %s83 = sadd.s32 %s82, 1
      %s84 = scalar_select %p81, %s82, %s83
      %p87 = pneg %p81
      %p88 = scmp.eq.s32.totalorder %s18, 3
      %p89 = por %p87, %p88
      %p90 = scmp.ne.s32.totalorder %s82, %s85
      %p91 = scmp.eq.s32.totalorder %s18, 0
      %p92 = por %p90, %p91
      %p93 = scmp.ne.s32.totalorder %s82, %s85
      %p94 = scmp.eq.s32.totalorder %s23, 3
      %p95 = por %p93, %p94
      %p96 = scmp.ne.s32.totalorder %s85, %s86
      %p97 = scmp.eq.s32.totalorder %s23, 0
      %p98 = por %p96, %p97
      %p99 = scmp.ne.s32.totalorder %s85, %s86
      %p100 = scmp.eq.s32.totalorder %s24, 3
      %p101 = por %p99, %p100
      %p103 = scmp.ne.s32.totalorder %s86, %s102
      %p104 = scmp.eq.s32.totalorder %s24, 0
      %p105 = por %p103, %p104
      %s106 = ssub.s32 %s25, %s37
      %p107 = scmp.eq.s32.totalorder %s106, 0
      %s109 = sadd.s32 %s108, 1
      %s110 = scalar_select %p107, %s108, %s109
      %p113 = pneg %p107
      %p114 = scmp.eq.s32.totalorder %s18, 3
      %p115 = por %p113, %p114
      %p116 = scmp.ne.s32.totalorder %s108, %s111
      %p117 = scmp.eq.s32.totalorder %s18, 0
      %p118 = por %p116, %p117
      %p119 = scmp.ne.s32.totalorder %s108, %s111
      %p120 = scmp.eq.s32.totalorder %s23, 3
      %p121 = por %p119, %p120
      %p122 = scmp.ne.s32.totalorder %s111, %s112
      %p123 = scmp.eq.s32.totalorder %s23, 0
      %p124 = por %p122, %p123
      %p125 = scmp.ne.s32.totalorder %s111, %s112
      %p126 = scmp.eq.s32.totalorder %s24, 3
      %p127 = por %p125, %p126
      %p129 = scmp.ne.s32.totalorder %s112, %s128
      %p130 = scmp.eq.s32.totalorder %s24, 0
      %p131 = por %p129, %p130
      %s132 = ssub.s32 %s25, %s37
      %s133 = ssub.s32 %s26, %s33
      %s134 = sor.u32 %s132, %s133
      %p135 = scmp.eq.s32.totalorder %s134, 0
      %s137 = sadd.s32 %s136, 1
      %s138 = scalar_select %p135, %s136, %s137
      %p141 = pneg %p135
      %p142 = scmp.eq.s32.totalorder %s18, 3
      %p143 = por %p141, %p142
      %p144 = scmp.ne.s32.totalorder %s136, %s139
      %p145 = scmp.eq.s32.totalorder %s18, 0
      %p146 = por %p144, %p145
      %p147 = scmp.ne.s32.totalorder %s136, %s139
      %p148 = scmp.eq.s32.totalorder %s23, 3
      %p149 = por %p147, %p148
      %p150 = scmp.ne.s32.totalorder %s139, %s140
      %p151 = scmp.eq.s32.totalorder %s23, 0
      %p152 = por %p150, %p151
      %p153 = scmp.ne.s32.totalorder %s139, %s140
      %p154 = scmp.eq.s32.totalorder %s24, 3
      %p155 = por %p153, %p154
      %p157 = scmp.ne.s32.totalorder %s140, %s156
      %p158 = scmp.eq.s32.totalorder %s24, 0
      %p159 = por %p157, %p158
      %p160 = scmp.le.s32.totalorder 1, %s18
      %p161 = scmp.lt.s32.totalorder %s18, 5
      %p162 = pnand %p160, %p161
      %p163 = pneg %p162
      // Predicated region
      $region9: #{tpu_custom_call.1} parent=5 // pred_check
        _
      $region10: #{tpu_custom_call.1} parent=5 // pred_check_branch
        %165 = sbr.rel (%p162) target = $region12
      $region11: #{tpu_custom_call.1} parent=5 // pred_region
        %s166 = ssub.s32 %s18, 1
        // Predicated region
        $region13: #{tpu_custom_call.1} parent=11 // pred_check
          %p167 = pneg %p51
        $region14: #{tpu_custom_call.1} parent=11 // pred_check_branch
          %169 = sbr.rel (%p167) target = $region16
        $region15: #{tpu_custom_call.1} parent=11 // pred_region
          _
        $region16: #{tpu_custom_call.1} parent=11 // pred_fallthru
          _
        // Predicated region
        $region17: #{tpu_custom_call.1} parent=11 // pred_check
          %p170 = pneg %p72
        $region18: #{tpu_custom_call.1} parent=11 // pred_check_branch
          %172 = sbr.rel (%p170) target = $region20
        $region19: #{tpu_custom_call.1} parent=11 // pred_region
          %174 = vsyncadd [#allocation4], 0
          %s176 = sshll.u32 %s1, 4
          %s177 = int_to_ptr.vmem [resolvable:$true] %s176
          %179 = dma.vmem_to_smem %s177, 16, [#allocation2], [#allocation4]
        $region20: #{tpu_custom_call.1} parent=11 // pred_fallthru
          _
      $region12: #{tpu_custom_call.1} parent=5 // pred_fallthru
        _
      %p180 = scmp.lt.s32.totalorder %s18, 4
      // Predicated region
      $region21: #{tpu_custom_call.1} parent=5 // pred_check
        %p181 = pneg %p180
      $region22: #{tpu_custom_call.1} parent=5 // pred_check_branch
        %183 = sbr.rel (%p181) target = $region24
      $region23: #{tpu_custom_call.1} parent=5 // pred_region
        _
      $region24: #{tpu_custom_call.1} parent=5 // pred_fallthru
        _
      %p184 = scmp.le.s32.totalorder 1, %s18
      %p185 = scmp.lt.s32.totalorder %s18, 5
      %p186 = pnand %p184, %p185
      %p187 = pneg %p186
      // Predicated region
      $region25: #{tpu_custom_call.1} parent=5 // pred_check
        _
      $region26: #{tpu_custom_call.1} parent=5 // pred_check_branch
        %189 = sbr.rel (%p186) target = $region28
      $region27: #{tpu_custom_call.1} parent=5 // pred_region
        %s190 = ssub.s32 %s18, 1
        // Predicated region
        $region29: #{tpu_custom_call.1} parent=27 // pred_check
          %p191 = pneg %p72
        $region30: #{tpu_custom_call.1} parent=27 // pred_check_branch
          %193 = sbr.rel (%p191) target = $region32
        $region31: #{tpu_custom_call.1} parent=27 // pred_region
          %195 = dma.done [#allocation4], 16
        $region32: #{tpu_custom_call.1} parent=27 // pred_fallthru
          _
        %196 = sfence
        %p197 = pneg %p51
        %p198 = pneg %p48
        %p199 = pneg %p72
        %p200 = pneg %p69
        %p201 = pneg %p98
        %p202 = pneg %p95
        %s203 = sand.u32 %s85, 1
        %s204 = scalar_lea.sflag [#allocation3], %s203
        %s205 = sand.u32 %s85, 1
        %s206 = smul.addr %s205, 16
        %s207 = scalar_lea.vmem [#allocation5], %s206
        %p208 = pneg %p124
        %p209 = pneg %p121
        %s210 = sand.u32 %s23, 1
        %s211 = scalar_lea.sflag [#allocation7], %s210
        %s212 = sand.u32 %s111, 1
        %s213 = smul.addr %s212, 16
        %s214 = scalar_lea.vmem [#allocation6], %s213
        %p215 = pneg %p152
        %p216 = pneg %p149
        %s217 = sand.u32 %s23, 1
        %s218 = scalar_lea.sflag [#allocation7], %s217
        %s219 = sand.u32 %s139, 1
        %s220 = smul.addr %s219, 512
        %s221 = scalar_lea.vmem [#allocation8], %s220
        %s222 = smul.u32 32, %s28
        %p223 = scmp.eq.s32.totalorder %s28, 0
        // Predicated region
        $region33: #{tpu_custom_call.1} parent=27 // pred_check
          %p224 = pneg %p223
        $region34: #{tpu_custom_call.1} parent=27 // pred_check_branch
          %226 = sbr.rel (%p224) target = $region36
        $region35: #{tpu_custom_call.1} parent=27 // pred_region
          %v227 = vlaneseq
          %v228 = vand.u32 %v227, 127
          %v229 = vadd.s32 %v228, 128
          %v230 = vcvt.s32.f32 %v228
          %v231 = vcvt.s32.f32 %v229
          %v232 = vld [vmem:[%s0] sm:$0xff]
          %234 = vset.pattern.permute.xlu0 0
          %235 = vperm.xlu0 %234, %v232
          %v236 = vpop.permute.xlu0 %235
          %v238 = vmul.f32 %v230, %v236
          %v239 = vmul.f32 %v231, %v236
          %v240 = vand.u32 2147483647, %v238
          %vm241 = vcmp.le.f32.partialorder %v240, 0.7853982
          %vm242 = vcmp.lt.s32.totalorder %v238, 0
          %v243 = vand.u32 %v238, 2139095040
          %v244 = vshrl.u32 %v243, 23
          %v245 = vsub.s32 %v244, 127
          %v246 = vand.u32 2147483647, %v238
          %v247 = vand.u32 %v246, 8388607
          %v248 = vor.u32 %v247, 8388608
          %v249 = vsub.s32 0, %v248
          %v250 = vadd.s32 %v245, 1
          %vm251 = vcmp.gt.s32.totalorder %v250, 0
          %v252 = vsel %vm251, %v250, 0
          %v253 = vshrl.u32 %v252, 5
          %v254 = vand.u32 %v252, 31
          %v255 = vsub.s32 32, %v254
          %v256 = vshrl.u32 683565275, %v255
          %v257 = vshll.u32 683565275, %v254
          %v258 = vshrl.u32 2475754826, %v255
          %v259 = vor.u32 %v257, %v258
          %v260 = vshll.u32 2475754826, %v254
          %v261 = vshrl.u32 2131351028, %v255
          %v262 = vor.u32 %v260, %v261
          %v263 = vshll.u32 2131351028, %v254
          %v264 = vshrl.u32 2102212464, %v255
          %v265 = vor.u32 %v263, %v264
          %v266 = vshll.u32 2102212464, %v254
          %v267 = vshrl.u32 920167782, %v255
          %v268 = vor.u32 %v266, %v267
          %v269 = vshll.u32 920167782, %v254
          %v270 = vshrl.u32 1326507024, %v255
          %v271 = vor.u32 %v269, %v270
          %vm272 = vcmp.lt.s32.totalorder %v253, 1
          %vm273 = vcmp.lt.s32.totalorder %v253, 2
          %vm274 = vcmp.lt.s32.totalorder %v253, 3
          %vm275 = vcmp.lt.s32.totalorder %v253, 4
          %v276 = vsel %vm272, %v256, %v259
          %v277 = vsel %vm275, %v265, 2102212464
          %v278 = vsel %vm274, %v262, %v277
          %v279 = vsel %vm273, %v276, %v278
          %v280 = vsel %vm272, %v259, %v262
          %v281 = vsel %vm275, %v268, 920167782
          %v282 = vsel %vm274, %v265, %v281
          %v283 = vsel %vm273, %v280, %v282
          %v284 = vsel %vm272, %v262, %v265
          %v285 = vsel %vm275, %v271, 1326507024
          %v286 = vsel %vm274, %v268, %v285
          %v287 = vsel %vm273, %v284, %v286
          %v288 = vshll.u32 %v248, 8
          %v289 = vand.u32 %v288, 65535
          %v290 = vshrl.u32 %v288, 16
          %v291 = vand.u32 %v287, 65535
          %v292 = vshrl.u32 %v287, 16
          %v293 = vmul.u32 %v289, %v291
          %v294 = vmul.u32 %v289, %v292
          %v295 = vmul.u32 %v290, %v291
          %v296 = vmul.u32 %v290, %v292
          %v297 = vshll.u32 %v294, 16
          %v298 = vshrl.u32 %v294, 16
          %v299 = vshll.u32 %v295, 16
          %v300 = vshrl.u32 %v295, 16
          %vm301 = vc.u32 %v293, %v297
          %v302 = vsel %vm301, 1, 0
          %v303 = vadd.s32 %v293, %v297
          %v304 = vadd.s32 %v296, %v302
          %vm305 = vc.u32 %v303, %v299
          %v306 = vsel %vm305, 1, 0
          %v307 = vadd.s32 %v303, %v299
          %v308 = vadd.s32 %v304, %v306
          %v309 = vadd.s32 %v308, %v298
          %v310 = vadd.s32 %v309, %v300
          %v311 = vand.u32 %v288, 65535
          %v312 = vshrl.u32 %v288, 16
          %v313 = vand.u32 %v283, 65535
          %v314 = vshrl.u32 %v283, 16
          %v315 = vmul.u32 %v311, %v313
          %v316 = vmul.u32 %v311, %v314
          %v317 = vmul.u32 %v312, %v313
          %v318 = vmul.u32 %v312, %v314
          %v319 = vshll.u32 %v316, 16
          %v320 = vshrl.u32 %v316, 16
          %v321 = vshll.u32 %v317, 16
          %v322 = vshrl.u32 %v317, 16
          %vm323 = vc.u32 %v315, %v319
          %v324 = vsel %vm323, 1, 0
          %v325 = vadd.s32 %v315, %v319
          %v326 = vadd.s32 %v318, %v324
          %vm327 = vc.u32 %v325, %v321
          %v328 = vsel %vm327, 1, 0
          %v329 = vadd.s32 %v325, %v321
          %v330 = vadd.s32 %v326, %v328
          %v331 = vadd.s32 %v330, %v320
          %v332 = vadd.s32 %v331, %v322
          %v333 = vmul.u32 %v288, %v279
          %v334 = vadd.s32 %v310, %v329
          %vm335 = vc.u32 %v310, %v329
          %v336 = vadd.s32 %v332, 1
          %v337 = vsel %vm335, %v336, %v332
          %v338 = vadd.s32 %v333, %v337
          %v339 = vadd.s32 %v338, 536870912
          %v340 = vshrl.u32 %v339, 30
          %v341 = vshll.u32 %v340, 30
          %v342 = vsub.s32 %v338, %v341
          %vm343 = vcmp.lt.s32.totalorder %v342, 0
          %v344 = vsub.s32 0, %v342
          %v345 = vsel %vm343, %v344, %v342
          %v346 = vclz %v345
          %v347 = vsub.s32 %v346, 2
          %vm348 = vcmp.gt.s32.totalorder 0, %v347
          %v349 = vsel %vm348, 0, %v347
          %v350 = vsub.s32 32, %v349
          %v351 = vshll.u32 %v342, %v349
          %v352 = vshrl.u32 %v334, %v350
          %v353 = vor.u32 %v351, %v352
          %v354 = vsub.s32 4294967266, %v349
          %v355 = vadd.s32 %v354, 127
          %v356 = vshll.u32 %v355, 23
          %v357 = vor.u32 4788187, %v356
          %v358 = vand.u32 2147483647, %v357
          %v360 = vcvt.s32.f32 %v353
          %v361 = vmul.f32 %v360, %v358
          %v362 = vxor.u32 %v361, 2147483648
          %v363 = vsel %vm242, %v362, %v361
          %v364 = vsub.s32 4, %v340
          %v365 = vsel %vm242, %v364, %v340
          %v366 = vsel %vm241, %v238, %v363
          %v367 = vsel %vm241, 0, %v365
          %v368 = vmul.f32 %v366, %v366
          %v369 = vmul.f32 %v368, -0.001358992
          %v370 = vadd.f32 %v369, 0.041655596
          %v371 = vmul.f32 %v368, %v370
          %v372 = vadd.f32 %v371, -0.4999988
          %v373 = vmul.f32 %v368, %v372
          %v374 = vadd.f32 1.0, %v373
          %v375 = vmul.f32 %v366, %v366
          %v376 = vmul.f32 %v375, -0.00019511016
          %v377 = vadd.f32 %v376, 0.008332121
          %v378 = vmul.f32 %v375, %v377
          %v379 = vadd.f32 %v378, -0.16666654
          %v380 = vmul.f32 %v375, %v379
          %v381 = vadd.f32 %v380, 1.0
          %v382 = vmul.f32 %v381, %v366
          %vm383 = vweird.f32 %v238
          %v384 = vadd.s32 %v367, 3
          %v385 = vand.u32 %v384, 3
          %vm386 = vcmp.lt.s32.totalorder %v385, 2
          %vm387 = vcmp.eq.s32.totalorder %v385, 0
          %v388 = vxor.u32 %v382, 2147483648
          %v389 = vsel %vm387, %v374, %v388
          %vm390 = vcmp.eq.s32.totalorder %v385, 2
          %v391 = vxor.u32 %v374, 2147483648
          %v392 = vsel %vm390, %v391, %v382
          %v393 = vsel %vm386, %v389, %v392
          %v394 = vsel %vm383, nan, %v393
          %v395 = vand.u32 2147483647, %v239
          %vm396 = vcmp.le.f32.partialorder %v395, 0.7853982
          %vm397 = vcmp.lt.s32.totalorder %v239, 0
          %v398 = vand.u32 %v239, 2139095040
          %v399 = vshrl.u32 %v398, 23
          %v400 = vsub.s32 %v399, 127
          %v401 = vand.u32 2147483647, %v239
          %v402 = vand.u32 %v401, 8388607
          %v403 = vor.u32 %v402, 8388608
          %v404 = vsub.s32 0, %v403
          %v405 = vadd.s32 %v400, 1
          %vm406 = vcmp.gt.s32.totalorder %v405, 0
          %v407 = vsel %vm406, %v405, 0
          %v408 = vshrl.u32 %v407, 5
          %v409 = vand.u32 %v407, 31
          %v410 = vsub.s32 32, %v409
          %v411 = vshrl.u32 683565275, %v410
          %v412 = vshll.u32 683565275, %v409
          %v413 = vshrl.u32 2475754826, %v410
          %v414 = vor.u32 %v412, %v413
          %v415 = vshll.u32 2475754826, %v409
          %v416 = vshrl.u32 2131351028, %v410
          %v417 = vor.u32 %v415, %v416
          %v418 = vshll.u32 2131351028, %v409
          %v419 = vshrl.u32 2102212464, %v410
          %v420 = vor.u32 %v418, %v419
          %v421 = vshll.u32 2102212464, %v409
          %v422 = vshrl.u32 920167782, %v410
          %v423 = vor.u32 %v421, %v422
          %v424 = vshll.u32 920167782, %v409
          %v425 = vshrl.u32 1326507024, %v410
          %v426 = vor.u32 %v424, %v425
          %vm427 = vcmp.lt.s32.totalorder %v408, 1
          %vm428 = vcmp.lt.s32.totalorder %v408, 2
          %vm429 = vcmp.lt.s32.totalorder %v408, 3
          %vm430 = vcmp.lt.s32.totalorder %v408, 4
          %v431 = vsel %vm427, %v411, %v414
          %v432 = vsel %vm430, %v420, 2102212464
          %v433 = vsel %vm429, %v417, %v432
          %v434 = vsel %vm428, %v431, %v433
          %v435 = vsel %vm427, %v414, %v417
          %v436 = vsel %vm430, %v423, 920167782
          %v437 = vsel %vm429, %v420, %v436
          %v438 = vsel %vm428, %v435, %v437
          %v439 = vsel %vm427, %v417, %v420
          %v440 = vsel %vm430, %v426, 1326507024
          %v441 = vsel %vm429, %v423, %v440
          %v442 = vsel %vm428, %v439, %v441
          %v443 = vshll.u32 %v403, 8
          %v444 = vand.u32 %v443, 65535
          %v445 = vshrl.u32 %v443, 16
          %v446 = vand.u32 %v442, 65535
          %v447 = vshrl.u32 %v442, 16
          %v448 = vmul.u32 %v444, %v446
          %v449 = vmul.u32 %v444, %v447
          %v450 = vmul.u32 %v445, %v446
          %v451 = vmul.u32 %v445, %v447
          %v452 = vshll.u32 %v449, 16
          %v453 = vshrl.u32 %v449, 16
          %v454 = vshll.u32 %v450, 16
          %v455 = vshrl.u32 %v450, 16
          %vm456 = vc.u32 %v448, %v452
          %v457 = vsel %vm456, 1, 0
          %v458 = vadd.s32 %v448, %v452
          %v459 = vadd.s32 %v451, %v457
          %vm460 = vc.u32 %v458, %v454
          %v461 = vsel %vm460, 1, 0
          %v462 = vadd.s32 %v458, %v454
          %v463 = vadd.s32 %v459, %v461
          %v464 = vadd.s32 %v463, %v453
          %v465 = vadd.s32 %v464, %v455
          %v466 = vand.u32 %v443, 65535
          %v467 = vshrl.u32 %v443, 16
          %v468 = vand.u32 %v438, 65535
          %v469 = vshrl.u32 %v438, 16
          %v470 = vmul.u32 %v466, %v468
          %v471 = vmul.u32 %v466, %v469
          %v472 = vmul.u32 %v467, %v468
          %v473 = vmul.u32 %v467, %v469
          %v474 = vshll.u32 %v471, 16
          %v475 = vshrl.u32 %v471, 16
          %v476 = vshll.u32 %v472, 16
          %v477 = vshrl.u32 %v472, 16
          %vm478 = vc.u32 %v470, %v474
          %v479 = vsel %vm478, 1, 0
          %v480 = vadd.s32 %v470, %v474
          %v481 = vadd.s32 %v473, %v479
          %vm482 = vc.u32 %v480, %v476
          %v483 = vsel %vm482, 1, 0
          %v484 = vadd.s32 %v480, %v476
          %v485 = vadd.s32 %v481, %v483
          %v486 = vadd.s32 %v485, %v475
          %v487 = vadd.s32 %v486, %v477
          %v488 = vmul.u32 %v443, %v434
          %v489 = vadd.s32 %v465, %v484
          %vm490 = vc.u32 %v465, %v484
          %v491 = vadd.s32 %v487, 1
          %v492 = vsel %vm490, %v491, %v487
          %v493 = vadd.s32 %v488, %v492
          %v494 = vadd.s32 %v493, 536870912
          %v495 = vshrl.u32 %v494, 30
          %v496 = vshll.u32 %v495, 30
          %v497 = vsub.s32 %v493, %v496
          %vm498 = vcmp.lt.s32.totalorder %v497, 0
          %v499 = vsub.s32 0, %v497
          %v500 = vsel %vm498, %v499, %v497
          %v501 = vclz %v500
          %v502 = vsub.s32 %v501, 2
          %vm503 = vcmp.gt.s32.totalorder 0, %v502
          %v504 = vsel %vm503, 0, %v502
          %v505 = vsub.s32 32, %v504
          %v506 = vshll.u32 %v497, %v504
          %v507 = vshrl.u32 %v489, %v505
          %v508 = vor.u32 %v506, %v507
          %v509 = vsub.s32 4294967266, %v504
          %v510 = vadd.s32 %v509, 127
          %v511 = vshll.u32 %v510, 23
          %v512 = vor.u32 4788187, %v511
          %v513 = vand.u32 2147483647, %v512
          %v515 = vcvt.s32.f32 %v508
          %v516 = vmul.f32 %v515, %v513
          %v517 = vxor.u32 %v516, 2147483648
          %v518 = vsel %vm397, %v517, %v516
          %v519 = vsub.s32 4, %v495
          %v520 = vsel %vm397, %v519, %v495
          %v521 = vsel %vm396, %v239, %v518
          %v522 = vsel %vm396, 0, %v520
          %v523 = vmul.f32 %v521, %v521
          %v524 = vmul.f32 %v523, -0.001358992
          %v525 = vadd.f32 %v524, 0.041655596
          %v526 = vmul.f32 %v523, %v525
          %v527 = vadd.f32 %v526, -0.4999988
          %v528 = vmul.f32 %v523, %v527
          %v529 = vadd.f32 1.0, %v528
          %v530 = vmul.f32 %v521, %v521
          %v531 = vmul.f32 %v530, -0.00019511016
          %v532 = vadd.f32 %v531, 0.008332121
          %v533 = vmul.f32 %v530, %v532
          %v534 = vadd.f32 %v533, -0.16666654
          %v535 = vmul.f32 %v530, %v534
          %v536 = vadd.f32 %v535, 1.0
          %v537 = vmul.f32 %v536, %v521
          %vm538 = vweird.f32 %v239
          %v539 = vadd.s32 %v522, 3
          %v540 = vand.u32 %v539, 3
          %vm541 = vcmp.lt.s32.totalorder %v540, 2
          %vm542 = vcmp.eq.s32.totalorder %v540, 0
          %v543 = vxor.u32 %v537, 2147483648
          %v544 = vsel %vm542, %v529, %v543
          %vm545 = vcmp.eq.s32.totalorder %v540, 2
          %v546 = vxor.u32 %v529, 2147483648
          %v547 = vsel %vm545, %v546, %v537
          %v548 = vsel %vm541, %v544, %v547
          %v549 = vsel %vm538, nan, %v548
          %550 = vst [vmem:[%s207] sm:$0xff] %v394
          %551 = vst [vmem:[%s207 + $0x8] sm:$0xff] %v549
          %v552 = vand.u32 2147483647, %v238
          %vm553 = vcmp.le.f32.partialorder %v552, 0.7853982
          %vm554 = vcmp.lt.s32.totalorder %v238, 0
          %v555 = vand.u32 %v238, 2139095040
          %v556 = vshrl.u32 %v555, 23
          %v557 = vsub.s32 %v556, 127
          %v558 = vand.u32 2147483647, %v238
          %v559 = vand.u32 %v558, 8388607
          %v560 = vor.u32 %v559, 8388608
          %v561 = vsub.s32 0, %v560
          %v562 = vadd.s32 %v557, 1
          %vm563 = vcmp.gt.s32.totalorder %v562, 0
          %v564 = vsel %vm563, %v562, 0
          %v565 = vshrl.u32 %v564, 5
          %v566 = vand.u32 %v564, 31
          %v567 = vsub.s32 32, %v566
          %v568 = vshrl.u32 683565275, %v567
          %v569 = vshll.u32 683565275, %v566
          %v570 = vshrl.u32 2475754826, %v567
          %v571 = vor.u32 %v569, %v570
          %v572 = vshll.u32 2475754826, %v566
          %v573 = vshrl.u32 2131351028, %v567
          %v574 = vor.u32 %v572, %v573
          %v575 = vshll.u32 2131351028, %v566
          %v576 = vshrl.u32 2102212464, %v567
          %v577 = vor.u32 %v575, %v576
          %v578 = vshll.u32 2102212464, %v566
          %v579 = vshrl.u32 920167782, %v567
          %v580 = vor.u32 %v578, %v579
          %v581 = vshll.u32 920167782, %v566
          %v582 = vshrl.u32 1326507024, %v567
          %v583 = vor.u32 %v581, %v582
          %vm584 = vcmp.lt.s32.totalorder %v565, 1
          %vm585 = vcmp.lt.s32.totalorder %v565, 2
          %vm586 = vcmp.lt.s32.totalorder %v565, 3
          %vm587 = vcmp.lt.s32.totalorder %v565, 4
          %v588 = vsel %vm584, %v568, %v571
          %v589 = vsel %vm587, %v577, 2102212464
          %v590 = vsel %vm586, %v574, %v589
          %v591 = vsel %vm585, %v588, %v590
          %v592 = vsel %vm584, %v571, %v574
          %v593 = vsel %vm587, %v580, 920167782
          %v594 = vsel %vm586, %v577, %v593
          %v595 = vsel %vm585, %v592, %v594
          %v596 = vsel %vm584, %v574, %v577
          %v597 = vsel %vm587, %v583, 1326507024
          %v598 = vsel %vm586, %v580, %v597
          %v599 = vsel %vm585, %v596, %v598
          %v600 = vshll.u32 %v560, 8
          %v601 = vand.u32 %v600, 65535
          %v602 = vshrl.u32 %v600, 16
          %v603 = vand.u32 %v599, 65535
          %v604 = vshrl.u32 %v599, 16
          %v605 = vmul.u32 %v601, %v603
          %v606 = vmul.u32 %v601, %v604
          %v607 = vmul.u32 %v602, %v603
          %v608 = vmul.u32 %v602, %v604
          %v609 = vshll.u32 %v606, 16
          %v610 = vshrl.u32 %v606, 16
          %v611 = vshll.u32 %v607, 16
          %v612 = vshrl.u32 %v607, 16
          %vm613 = vc.u32 %v605, %v609
          %v614 = vsel %vm613, 1, 0
          %v615 = vadd.s32 %v605, %v609
          %v616 = vadd.s32 %v608, %v614
          %vm617 = vc.u32 %v615, %v611
          %v618 = vsel %vm617, 1, 0
          %v619 = vadd.s32 %v615, %v611
          %v620 = vadd.s32 %v616, %v618
          %v621 = vadd.s32 %v620, %v610
          %v622 = vadd.s32 %v621, %v612
          %v623 = vand.u32 %v600, 65535
          %v624 = vshrl.u32 %v600, 16
          %v625 = vand.u32 %v595, 65535
          %v626 = vshrl.u32 %v595, 16
          %v627 = vmul.u32 %v623, %v625
          %v628 = vmul.u32 %v623, %v626
          %v629 = vmul.u32 %v624, %v625
          %v630 = vmul.u32 %v624, %v626
          %v631 = vshll.u32 %v628, 16
          %v632 = vshrl.u32 %v628, 16
          %v633 = vshll.u32 %v629, 16
          %v634 = vshrl.u32 %v629, 16
          %vm635 = vc.u32 %v627, %v631
          %v636 = vsel %vm635, 1, 0
          %v637 = vadd.s32 %v627, %v631
          %v638 = vadd.s32 %v630, %v636
          %vm639 = vc.u32 %v637, %v633
          %v640 = vsel %vm639, 1, 0
          %v641 = vadd.s32 %v637, %v633
          %v642 = vadd.s32 %v638, %v640
          %v643 = vadd.s32 %v642, %v632
          %v644 = vadd.s32 %v643, %v634
          %v645 = vmul.u32 %v600, %v591
          %v646 = vadd.s32 %v622, %v641
          %vm647 = vc.u32 %v622, %v641
          %v648 = vadd.s32 %v644, 1
          %v649 = vsel %vm647, %v648, %v644
          %v650 = vadd.s32 %v645, %v649
          %v651 = vadd.s32 %v650, 536870912
          %v652 = vshrl.u32 %v651, 30
          %v653 = vshll.u32 %v652, 30
          %v654 = vsub.s32 %v650, %v653
          %vm655 = vcmp.lt.s32.totalorder %v654, 0
          %v656 = vsub.s32 0, %v654
          %v657 = vsel %vm655, %v656, %v654
          %v658 = vclz %v657
          %v659 = vsub.s32 %v658, 2
          %vm660 = vcmp.gt.s32.totalorder 0, %v659
          %v661 = vsel %vm660, 0, %v659
          %v662 = vsub.s32 32, %v661
          %v663 = vshll.u32 %v654, %v661
          %v664 = vshrl.u32 %v646, %v662
          %v665 = vor.u32 %v663, %v664
          %v666 = vsub.s32 4294967266, %v661
          %v667 = vadd.s32 %v666, 127
          %v668 = vshll.u32 %v667, 23
          %v669 = vor.u32 4788187, %v668
          %v670 = vand.u32 2147483647, %v669
          %v672 = vcvt.s32.f32 %v665
          %v673 = vmul.f32 %v672, %v670
          %v674 = vxor.u32 %v673, 2147483648
          %v675 = vsel %vm554, %v674, %v673
          %v676 = vsub.s32 4, %v652
          %v677 = vsel %vm554, %v676, %v652
          %v678 = vsel %vm553, %v238, %v675
          %v679 = vsel %vm553, 0, %v677
          %v680 = vmul.f32 %v678, %v678
          %v681 = vmul.f32 %v680, -0.001358992
          %v682 = vadd.f32 %v681, 0.041655596
          %v683 = vmul.f32 %v680, %v682
          %v684 = vadd.f32 %v683, -0.4999988
          %v685 = vmul.f32 %v680, %v684
          %v686 = vadd.f32 1.0, %v685
          %v687 = vmul.f32 %v678, %v678
          %v688 = vmul.f32 %v687, -0.00019511016
          %v689 = vadd.f32 %v688, 0.008332121
          %v690 = vmul.f32 %v687, %v689
          %v691 = vadd.f32 %v690, -0.16666654
          %v692 = vmul.f32 %v687, %v691
          %v693 = vadd.f32 %v692, 1.0
          %v694 = vmul.f32 %v693, %v678
          %vm695 = vweird.f32 %v238
          %v696 = vand.u32 %v679, 3
          %vm697 = vcmp.lt.s32.totalorder %v696, 2
          %vm698 = vcmp.eq.s32.totalorder %v696, 0
          %v699 = vxor.u32 %v694, 2147483648
          %v700 = vsel %vm698, %v686, %v699
          %vm701 = vcmp.eq.s32.totalorder %v696, 2
          %v702 = vxor.u32 %v686, 2147483648
          %v703 = vsel %vm701, %v702, %v694
          %v704 = vsel %vm697, %v700, %v703
          %v705 = vsel %vm695, nan, %v704
          %v706 = vand.u32 2147483647, %v239
          %vm707 = vcmp.le.f32.partialorder %v706, 0.7853982
          %vm708 = vcmp.lt.s32.totalorder %v239, 0
          %v709 = vand.u32 %v239, 2139095040
          %v710 = vshrl.u32 %v709, 23
          %v711 = vsub.s32 %v710, 127
          %v712 = vand.u32 2147483647, %v239
          %v713 = vand.u32 %v712, 8388607
          %v714 = vor.u32 %v713, 8388608
          %v715 = vsub.s32 0, %v714
          %v716 = vadd.s32 %v711, 1
          %vm717 = vcmp.gt.s32.totalorder %v716, 0
          %v718 = vsel %vm717, %v716, 0
          %v719 = vshrl.u32 %v718, 5
          %v720 = vand.u32 %v718, 31
          %v721 = vsub.s32 32, %v720
          %v722 = vshrl.u32 683565275, %v721
          %v723 = vshll.u32 683565275, %v720
          %v724 = vshrl.u32 2475754826, %v721
          %v725 = vor.u32 %v723, %v724
          %v726 = vshll.u32 2475754826, %v720
          %v727 = vshrl.u32 2131351028, %v721
          %v728 = vor.u32 %v726, %v727
          %v729 = vshll.u32 2131351028, %v720
          %v730 = vshrl.u32 2102212464, %v721
          %v731 = vor.u32 %v729, %v730
          %v732 = vshll.u32 2102212464, %v720
          %v733 = vshrl.u32 920167782, %v721
          %v734 = vor.u32 %v732, %v733
          %v735 = vshll.u32 920167782, %v720
          %v736 = vshrl.u32 1326507024, %v721
          %v737 = vor.u32 %v735, %v736
          %vm738 = vcmp.lt.s32.totalorder %v719, 1
          %vm739 = vcmp.lt.s32.totalorder %v719, 2
          %vm740 = vcmp.lt.s32.totalorder %v719, 3
          %vm741 = vcmp.lt.s32.totalorder %v719, 4
          %v742 = vsel %vm738, %v722, %v725
          %v743 = vsel %vm741, %v731, 2102212464
          %v744 = vsel %vm740, %v728, %v743
          %v745 = vsel %vm739, %v742, %v744
          %v746 = vsel %vm738, %v725, %v728
          %v747 = vsel %vm741, %v734, 920167782
          %v748 = vsel %vm740, %v731, %v747
          %v749 = vsel %vm739, %v746, %v748
          %v750 = vsel %vm738, %v728, %v731
          %v751 = vsel %vm741, %v737, 1326507024
          %v752 = vsel %vm740, %v734, %v751
          %v753 = vsel %vm739, %v750, %v752
          %v754 = vshll.u32 %v714, 8
          %v755 = vand.u32 %v754, 65535
          %v756 = vshrl.u32 %v754, 16
          %v757 = vand.u32 %v753, 65535
          %v758 = vshrl.u32 %v753, 16
          %v759 = vmul.u32 %v755, %v757
          %v760 = vmul.u32 %v755, %v758
          %v761 = vmul.u32 %v756, %v757
          %v762 = vmul.u32 %v756, %v758
          %v763 = vshll.u32 %v760, 16
          %v764 = vshrl.u32 %v760, 16
          %v765 = vshll.u32 %v761, 16
          %v766 = vshrl.u32 %v761, 16
          %vm767 = vc.u32 %v759, %v763
          %v768 = vsel %vm767, 1, 0
          %v769 = vadd.s32 %v759, %v763
          %v770 = vadd.s32 %v762, %v768
          %vm771 = vc.u32 %v769, %v765
          %v772 = vsel %vm771, 1, 0
          %v773 = vadd.s32 %v769, %v765
          %v774 = vadd.s32 %v770, %v772
          %v775 = vadd.s32 %v774, %v764
          %v776 = vadd.s32 %v775, %v766
          %v777 = vand.u32 %v754, 65535
          %v778 = vshrl.u32 %v754, 16
          %v779 = vand.u32 %v749, 65535
          %v780 = vshrl.u32 %v749, 16
          %v781 = vmul.u32 %v777, %v779
          %v782 = vmul.u32 %v777, %v780
          %v783 = vmul.u32 %v778, %v779
          %v784 = vmul.u32 %v778, %v780
          %v785 = vshll.u32 %v782, 16
          %v786 = vshrl.u32 %v782, 16
          %v787 = vshll.u32 %v783, 16
          %v788 = vshrl.u32 %v783, 16
          %vm789 = vc.u32 %v781, %v785
          %v790 = vsel %vm789, 1, 0
          %v791 = vadd.s32 %v781, %v785
          %v792 = vadd.s32 %v784, %v790
          %vm793 = vc.u32 %v791, %v787
          %v794 = vsel %vm793, 1, 0
          %v795 = vadd.s32 %v791, %v787
          %v796 = vadd.s32 %v792, %v794
          %v797 = vadd.s32 %v796, %v786
          %v798 = vadd.s32 %v797, %v788
          %v799 = vmul.u32 %v754, %v745
          %v800 = vadd.s32 %v776, %v795
          %vm801 = vc.u32 %v776, %v795
          %v802 = vadd.s32 %v798, 1
          %v803 = vsel %vm801, %v802, %v798
          %v804 = vadd.s32 %v799, %v803
          %v805 = vadd.s32 %v804, 536870912
          %v806 = vshrl.u32 %v805, 30
          %v807 = vshll.u32 %v806, 30
          %v808 = vsub.s32 %v804, %v807
          %vm809 = vcmp.lt.s32.totalorder %v808, 0
          %v810 = vsub.s32 0, %v808
          %v811 = vsel %vm809, %v810, %v808
          %v812 = vclz %v811
          %v813 = vsub.s32 %v812, 2
          %vm814 = vcmp.gt.s32.totalorder 0, %v813
          %v815 = vsel %vm814, 0, %v813
          %v816 = vsub.s32 32, %v815
          %v817 = vshll.u32 %v808, %v815
          %v818 = vshrl.u32 %v800, %v816
          %v819 = vor.u32 %v817, %v818
          %v820 = vsub.s32 4294967266, %v815
          %v821 = vadd.s32 %v820, 127
          %v822 = vshll.u32 %v821, 23
          %v823 = vor.u32 4788187, %v822
          %v824 = vand.u32 2147483647, %v823
          %v826 = vcvt.s32.f32 %v819
          %v827 = vmul.f32 %v826, %v824
          %v828 = vxor.u32 %v827, 2147483648
          %v829 = vsel %vm708, %v828, %v827
          %v830 = vsub.s32 4, %v806
          %v831 = vsel %vm708, %v830, %v806
          %v832 = vsel %vm707, %v239, %v829
          %v833 = vsel %vm707, 0, %v831
          %v834 = vmul.f32 %v832, %v832
          %v835 = vmul.f32 %v834, -0.001358992
          %v836 = vadd.f32 %v835, 0.041655596
          %v837 = vmul.f32 %v834, %v836
          %v838 = vadd.f32 %v837, -0.4999988
          %v839 = vmul.f32 %v834, %v838
          %v840 = vadd.f32 1.0, %v839
          %v841 = vmul.f32 %v832, %v832
          %v842 = vmul.f32 %v841, -0.00019511016
          %v843 = vadd.f32 %v842, 0.008332121
          %v844 = vmul.f32 %v841, %v843
          %v845 = vadd.f32 %v844, -0.16666654
          %v846 = vmul.f32 %v841, %v845
          %v847 = vadd.f32 %v846, 1.0
          %v848 = vmul.f32 %v847, %v832
          %vm849 = vweird.f32 %v239
          %v850 = vand.u32 %v833, 3
          %vm851 = vcmp.lt.s32.totalorder %v850, 2
          %vm852 = vcmp.eq.s32.totalorder %v850, 0
          %v853 = vxor.u32 %v848, 2147483648
          %v854 = vsel %vm852, %v840, %v853
          %vm855 = vcmp.eq.s32.totalorder %v850, 2
          %v856 = vxor.u32 %v840, 2147483648
          %v857 = vsel %vm855, %v856, %v848
          %v858 = vsel %vm851, %v854, %v857
          %v859 = vsel %vm849, nan, %v858
          %860 = vst [vmem:[%s214] sm:$0xff] %v705
          %861 = vst [vmem:[%s214 + $0x8] sm:$0xff] %v859
        $region36: #{tpu_custom_call.1} parent=27 // pred_fallthru
          _
        %v862 = vlaneseq
        %v863 = vshrl.u32 %v862, 7
        %v864 = vadd.s32 %v863, 8
        %v865 = vadd.s32 %v863, 16
        %v866 = vadd.s32 %v863, 24
        %v867 = vadd.s32 %v863, 32
        %v868 = vadd.s32 %v863, 40
        %v869 = vadd.s32 %v863, 48
        %v870 = vadd.s32 %v863, 56
        %v871 = vadd.s32 %v863, 64
        %v872 = vadd.s32 %v863, 72
        %v873 = vadd.s32 %v863, 80
        %v874 = vadd.s32 %v863, 88
        %v875 = vadd.s32 %v863, 96
        %v876 = vadd.s32 %v863, 104
        %v877 = vadd.s32 %v863, 112
        %v878 = vadd.s32 %v863, 120
        %v879 = vadd.s32 %v863, 128
        %v880 = vadd.s32 %v863, 136
        %v881 = vadd.s32 %v863, 144
        %v882 = vadd.s32 %v863, 152
        %v883 = vadd.s32 %v863, 160
        %v884 = vadd.s32 %v863, 168
        %v885 = vadd.s32 %v863, 176
        %v886 = vadd.s32 %v863, 184
        %v887 = vadd.s32 %v863, 192
        %v888 = vadd.s32 %v863, 200
        %v889 = vadd.s32 %v863, 208
        %v890 = vadd.s32 %v863, 216
        %v891 = vadd.s32 %v863, 224
        %v892 = vadd.s32 %v863, 232
        %v893 = vadd.s32 %v863, 240
        %v894 = vadd.s32 %v863, 248
        %s895 = smul.u32 %s28, 256
        %v896 = vstv %s895
        %v897 = vadd.s32 %v863, %v896
        %v898 = vadd.s32 %v864, %v896
        %v899 = vadd.s32 %v865, %v896
        %v900 = vadd.s32 %v866, %v896
        %v901 = vadd.s32 %v867, %v896
        %v902 = vadd.s32 %v868, %v896
        %v903 = vadd.s32 %v869, %v896
        %v904 = vadd.s32 %v870, %v896
        %v905 = vadd.s32 %v871, %v896
        %v906 = vadd.s32 %v872, %v896
        %v907 = vadd.s32 %v873, %v896
        %v908 = vadd.s32 %v874, %v896
        %v909 = vadd.s32 %v875, %v896
        %v910 = vadd.s32 %v876, %v896
        %v911 = vadd.s32 %v877, %v896
        %v912 = vadd.s32 %v878, %v896
        %v913 = vadd.s32 %v879, %v896
        %v914 = vadd.s32 %v880, %v896
        %v915 = vadd.s32 %v881, %v896
        %v916 = vadd.s32 %v882, %v896
        %v917 = vadd.s32 %v883, %v896
        %v918 = vadd.s32 %v884, %v896
        %v919 = vadd.s32 %v885, %v896
        %v920 = vadd.s32 %v886, %v896
        %v921 = vadd.s32 %v887, %v896
        %v922 = vadd.s32 %v888, %v896
        %v923 = vadd.s32 %v889, %v896
        %v924 = vadd.s32 %v890, %v896
        %v925 = vadd.s32 %v891, %v896
        %v926 = vadd.s32 %v892, %v896
        %v927 = vadd.s32 %v893, %v896
        %v928 = vadd.s32 %v894, %v896
        %v929 = vlaneseq
        %v930 = vand.u32 %v929, 127
        %v931 = vadd.s32 %v930, 128
        %v932 = vshra.s32 %v897, 4
        %v933 = vshra.s32 %v898, 4
        %v934 = vshra.s32 %v899, 4
        %v935 = vshra.s32 %v900, 4
        %v936 = vshra.s32 %v901, 4
        %v937 = vshra.s32 %v902, 4
        %v938 = vshra.s32 %v903, 4
        %v939 = vshra.s32 %v904, 4
        %v940 = vshra.s32 %v905, 4
        %v941 = vshra.s32 %v906, 4
        %v942 = vshra.s32 %v907, 4
        %v943 = vshra.s32 %v908, 4
        %v944 = vshra.s32 %v909, 4
        %v945 = vshra.s32 %v910, 4
        %v946 = vshra.s32 %v911, 4
        %v947 = vshra.s32 %v912, 4
        %v948 = vshra.s32 %v913, 4
        %v949 = vshra.s32 %v914, 4
        %v950 = vshra.s32 %v915, 4
        %v951 = vshra.s32 %v916, 4
        %v952 = vshra.s32 %v917, 4
        %v953 = vshra.s32 %v918, 4
        %v954 = vshra.s32 %v919, 4
        %v955 = vshra.s32 %v920, 4
        %v956 = vshra.s32 %v921, 4
        %v957 = vshra.s32 %v922, 4
        %v958 = vshra.s32 %v923, 4
        %v959 = vshra.s32 %v924, 4
        %v960 = vshra.s32 %v925, 4
        %v961 = vshra.s32 %v926, 4
        %v962 = vshra.s32 %v927, 4
        %v963 = vshra.s32 %v928, 4
        %v964 = vand.u32 %v897, 15
        %v965 = vand.u32 %v898, 15
        %v966 = vand.u32 %v899, 15
        %v967 = vand.u32 %v900, 15
        %v968 = vand.u32 %v901, 15
        %v969 = vand.u32 %v902, 15
        %v970 = vand.u32 %v903, 15
        %v971 = vand.u32 %v904, 15
        %v972 = vand.u32 %v905, 15
        %v973 = vand.u32 %v906, 15
        %v974 = vand.u32 %v907, 15
        %v975 = vand.u32 %v908, 15
        %v976 = vand.u32 %v909, 15
        %v977 = vand.u32 %v910, 15
        %v978 = vand.u32 %v911, 15
        %v979 = vand.u32 %v912, 15
        %v980 = vand.u32 %v913, 15
        %v981 = vand.u32 %v914, 15
        %v982 = vand.u32 %v915, 15
        %v983 = vand.u32 %v916, 15
        %v984 = vand.u32 %v917, 15
        %v985 = vand.u32 %v918, 15
        %v986 = vand.u32 %v919, 15
        %v987 = vand.u32 %v920, 15
        %v988 = vand.u32 %v921, 15
        %v989 = vand.u32 %v922, 15
        %v990 = vand.u32 %v923, 15
        %v991 = vand.u32 %v924, 15
        %v992 = vand.u32 %v925, 15
        %v993 = vand.u32 %v926, 15
        %v994 = vand.u32 %v927, 15
        %v995 = vand.u32 %v928, 15
        %v996 = vshra.s32 %v930, 4
        %v997 = vshra.s32 %v931, 4
        %v998 = vand.u32 %v930, 15
        %v999 = vand.u32 %v931, 15
        %v1000 = vsub.s32 %v932, %v996
        %v1001 = vsub.s32 %v932, %v997
        %v1002 = vsub.s32 %v933, %v996
        %v1003 = vsub.s32 %v933, %v997
        %v1004 = vsub.s32 %v934, %v996
        %v1005 = vsub.s32 %v934, %v997
        %v1006 = vsub.s32 %v935, %v996
        %v1007 = vsub.s32 %v935, %v997
        %v1008 = vsub.s32 %v936, %v996
        %v1009 = vsub.s32 %v936, %v997
        %v1010 = vsub.s32 %v937, %v996
        %v1011 = vsub.s32 %v937, %v997
        %v1012 = vsub.s32 %v938, %v996
        %v1013 = vsub.s32 %v938, %v997
        %v1014 = vsub.s32 %v939, %v996
        %v1015 = vsub.s32 %v939, %v997
        %v1016 = vsub.s32 %v940, %v996
        %v1017 = vsub.s32 %v940, %v997
        %v1018 = vsub.s32 %v941, %v996
        %v1019 = vsub.s32 %v941, %v997
        %v1020 = vsub.s32 %v942, %v996
        %v1021 = vsub.s32 %v942, %v997
        %v1022 = vsub.s32 %v943, %v996
        %v1023 = vsub.s32 %v943, %v997
        %v1024 = vsub.s32 %v944, %v996
        %v1025 = vsub.s32 %v944, %v997
        %v1026 = vsub.s32 %v945, %v996
        %v1027 = vsub.s32 %v945, %v997
        %v1028 = vsub.s32 %v946, %v996
        %v1029 = vsub.s32 %v946, %v997
        %v1030 = vsub.s32 %v947, %v996
        %v1031 = vsub.s32 %v947, %v997
        %v1032 = vsub.s32 %v948, %v996
        %v1033 = vsub.s32 %v948, %v997
        %v1034 = vsub.s32 %v949, %v996
        %v1035 = vsub.s32 %v949, %v997
        %v1036 = vsub.s32 %v950, %v996
        %v1037 = vsub.s32 %v950, %v997
        %v1038 = vsub.s32 %v951, %v996
        %v1039 = vsub.s32 %v951, %v997
        %v1040 = vsub.s32 %v952, %v996
        %v1041 = vsub.s32 %v952, %v997
        %v1042 = vsub.s32 %v953, %v996
        %v1043 = vsub.s32 %v953, %v997
        %v1044 = vsub.s32 %v954, %v996
        %v1045 = vsub.s32 %v954, %v997
        %v1046 = vsub.s32 %v955, %v996
        %v1047 = vsub.s32 %v955, %v997
        %v1048 = vsub.s32 %v956, %v996
        %v1049 = vsub.s32 %v956, %v997
        %v1050 = vsub.s32 %v957, %v996
        %v1051 = vsub.s32 %v957, %v997
        %v1052 = vsub.s32 %v958, %v996
        %v1053 = vsub.s32 %v958, %v997
        %v1054 = vsub.s32 %v959, %v996
        %v1055 = vsub.s32 %v959, %v997
        %v1056 = vsub.s32 %v960, %v996
        %v1057 = vsub.s32 %v960, %v997
        %v1058 = vsub.s32 %v961, %v996
        %v1059 = vsub.s32 %v961, %v997
        %v1060 = vsub.s32 %v962, %v996
        %v1061 = vsub.s32 %v962, %v997
        %v1062 = vsub.s32 %v963, %v996
        %v1063 = vsub.s32 %v963, %v997
        %vm1064 = vcmp.lt.s32.totalorder %v1000, 0
        %v1065 = vsub.s32 0, %v1000
        %v1066 = vsel %vm1064, %v1065, %v1000
        %vm1067 = vcmp.lt.s32.totalorder %v1001, 0
        %v1068 = vsub.s32 0, %v1001
        %v1069 = vsel %vm1067, %v1068, %v1001
        %vm1070 = vcmp.lt.s32.totalorder %v1002, 0
        %v1071 = vsub.s32 0, %v1002
        %v1072 = vsel %vm1070, %v1071, %v1002
        %vm1073 = vcmp.lt.s32.totalorder %v1003, 0
        %v1074 = vsub.s32 0, %v1003
        %v1075 = vsel %vm1073, %v1074, %v1003
        %vm1076 = vcmp.lt.s32.totalorder %v1004, 0
        %v1077 = vsub.s32 0, %v1004
        %v1078 = vsel %vm1076, %v1077, %v1004
        %vm1079 = vcmp.lt.s32.totalorder %v1005, 0
        %v1080 = vsub.s32 0, %v1005
        %v1081 = vsel %vm1079, %v1080, %v1005
        %vm1082 = vcmp.lt.s32.totalorder %v1006, 0
        %v1083 = vsub.s32 0, %v1006
        %v1084 = vsel %vm1082, %v1083, %v1006
        %vm1085 = vcmp.lt.s32.totalorder %v1007, 0
        %v1086 = vsub.s32 0, %v1007
        %v1087 = vsel %vm1085, %v1086, %v1007
        %vm1088 = vcmp.lt.s32.totalorder %v1008, 0
        %v1089 = vsub.s32 0, %v1008
        %v1090 = vsel %vm1088, %v1089, %v1008
        %vm1091 = vcmp.lt.s32.totalorder %v1009, 0
        %v1092 = vsub.s32 0, %v1009
        %v1093 = vsel %vm1091, %v1092, %v1009
        %vm1094 = vcmp.lt.s32.totalorder %v1010, 0
        %v1095 = vsub.s32 0, %v1010
        %v1096 = vsel %vm1094, %v1095, %v1010
        %vm1097 = vcmp.lt.s32.totalorder %v1011, 0
        %v1098 = vsub.s32 0, %v1011
        %v1099 = vsel %vm1097, %v1098, %v1011
        %vm1100 = vcmp.lt.s32.totalorder %v1012, 0
        %v1101 = vsub.s32 0, %v1012
        %v1102 = vsel %vm1100, %v1101, %v1012
        %vm1103 = vcmp.lt.s32.totalorder %v1013, 0
        %v1104 = vsub.s32 0, %v1013
        %v1105 = vsel %vm1103, %v1104, %v1013
        %vm1106 = vcmp.lt.s32.totalorder %v1014, 0
        %v1107 = vsub.s32 0, %v1014
        %v1108 = vsel %vm1106, %v1107, %v1014
        %vm1109 = vcmp.lt.s32.totalorder %v1015, 0
        %v1110 = vsub.s32 0, %v1015
        %v1111 = vsel %vm1109, %v1110, %v1015
        %vm1112 = vcmp.lt.s32.totalorder %v1016, 0
        %v1113 = vsub.s32 0, %v1016
        %v1114 = vsel %vm1112, %v1113, %v1016
        %vm1115 = vcmp.lt.s32.totalorder %v1017, 0
        %v1116 = vsub.s32 0, %v1017
        %v1117 = vsel %vm1115, %v1116, %v1017
        %vm1118 = vcmp.lt.s32.totalorder %v1018, 0
        %v1119 = vsub.s32 0, %v1018
        %v1120 = vsel %vm1118, %v1119, %v1018
        %vm1121 = vcmp.lt.s32.totalorder %v1019, 0
        %v1122 = vsub.s32 0, %v1019
        %v1123 = vsel %vm1121, %v1122, %v1019
        %vm1124 = vcmp.lt.s32.totalorder %v1020, 0
        %v1125 = vsub.s32 0, %v1020
        %v1126 = vsel %vm1124, %v1125, %v1020
        %vm1127 = vcmp.lt.s32.totalorder %v1021, 0
        %v1128 = vsub.s32 0, %v1021
        %v1129 = vsel %vm1127, %v1128, %v1021
        %vm1130 = vcmp.lt.s32.totalorder %v1022, 0
        %v1131 = vsub.s32 0, %v1022
        %v1132 = vsel %vm1130, %v1131, %v1022
        %vm1133 = vcmp.lt.s32.totalorder %v1023, 0
        %v1134 = vsub.s32 0, %v1023
        %v1135 = vsel %vm1133, %v1134, %v1023
        %vm1136 = vcmp.lt.s32.totalorder %v1024, 0
        %v1137 = vsub.s32 0, %v1024
        %v1138 = vsel %vm1136, %v1137, %v1024
        %vm1139 = vcmp.lt.s32.totalorder %v1025, 0
        %v1140 = vsub.s32 0, %v1025
        %v1141 = vsel %vm1139, %v1140, %v1025
        %vm1142 = vcmp.lt.s32.totalorder %v1026, 0
        %v1143 = vsub.s32 0, %v1026
        %v1144 = vsel %vm1142, %v1143, %v1026
        %vm1145 = vcmp.lt.s32.totalorder %v1027, 0
        %v1146 = vsub.s32 0, %v1027
        %v1147 = vsel %vm1145, %v1146, %v1027
        %vm1148 = vcmp.lt.s32.totalorder %v1028, 0
        %v1149 = vsub.s32 0, %v1028
        %v1150 = vsel %vm1148, %v1149, %v1028
        %vm1151 = vcmp.lt.s32.totalorder %v1029, 0
        %v1152 = vsub.s32 0, %v1029
        %v1153 = vsel %vm1151, %v1152, %v1029
        %vm1154 = vcmp.lt.s32.totalorder %v1030, 0
        %v1155 = vsub.s32 0, %v1030
        %v1156 = vsel %vm1154, %v1155, %v1030
        %vm1157 = vcmp.lt.s32.totalorder %v1031, 0
        %v1158 = vsub.s32 0, %v1031
        %v1159 = vsel %vm1157, %v1158, %v1031
        %vm1160 = vcmp.lt.s32.totalorder %v1032, 0
        %v1161 = vsub.s32 0, %v1032
        %v1162 = vsel %vm1160, %v1161, %v1032
        %vm1163 = vcmp.lt.s32.totalorder %v1033, 0
        %v1164 = vsub.s32 0, %v1033
        %v1165 = vsel %vm1163, %v1164, %v1033
        %vm1166 = vcmp.lt.s32.totalorder %v1034, 0
        %v1167 = vsub.s32 0, %v1034
        %v1168 = vsel %vm1166, %v1167, %v1034
        %vm1169 = vcmp.lt.s32.totalorder %v1035, 0
        %v1170 = vsub.s32 0, %v1035
        %v1171 = vsel %vm1169, %v1170, %v1035
        %vm1172 = vcmp.lt.s32.totalorder %v1036, 0
        %v1173 = vsub.s32 0, %v1036
        %v1174 = vsel %vm1172, %v1173, %v1036
        %vm1175 = vcmp.lt.s32.totalorder %v1037, 0
        %v1176 = vsub.s32 0, %v1037
        %v1177 = vsel %vm1175, %v1176, %v1037
        %vm1178 = vcmp.lt.s32.totalorder %v1038, 0
        %v1179 = vsub.s32 0, %v1038
        %v1180 = vsel %vm1178, %v1179, %v1038
        %vm1181 = vcmp.lt.s32.totalorder %v1039, 0
        %v1182 = vsub.s32 0, %v1039
        %v1183 = vsel %vm1181, %v1182, %v1039
        %vm1184 = vcmp.lt.s32.totalorder %v1040, 0
        %v1185 = vsub.s32 0, %v1040
        %v1186 = vsel %vm1184, %v1185, %v1040
        %vm1187 = vcmp.lt.s32.totalorder %v1041, 0
        %v1188 = vsub.s32 0, %v1041
        %v1189 = vsel %vm1187, %v1188, %v1041
        %vm1190 = vcmp.lt.s32.totalorder %v1042, 0
        %v1191 = vsub.s32 0, %v1042
        %v1192 = vsel %vm1190, %v1191, %v1042
        %vm1193 = vcmp.lt.s32.totalorder %v1043, 0
        %v1194 = vsub.s32 0, %v1043
        %v1195 = vsel %vm1193, %v1194, %v1043
        %vm1196 = vcmp.lt.s32.totalorder %v1044, 0
        %v1197 = vsub.s32 0, %v1044
        %v1198 = vsel %vm1196, %v1197, %v1044
        %vm1199 = vcmp.lt.s32.totalorder %v1045, 0
        %v1200 = vsub.s32 0, %v1045
        %v1201 = vsel %vm1199, %v1200, %v1045
        %vm1202 = vcmp.lt.s32.totalorder %v1046, 0
        %v1203 = vsub.s32 0, %v1046
        %v1204 = vsel %vm1202, %v1203, %v1046
        %vm1205 = vcmp.lt.s32.totalorder %v1047, 0
        %v1206 = vsub.s32 0, %v1047
        %v1207 = vsel %vm1205, %v1206, %v1047
        %vm1208 = vcmp.lt.s32.totalorder %v1048, 0
        %v1209 = vsub.s32 0, %v1048
        %v1210 = vsel %vm1208, %v1209, %v1048
        %vm1211 = vcmp.lt.s32.totalorder %v1049, 0
        %v1212 = vsub.s32 0, %v1049
        %v1213 = vsel %vm1211, %v1212, %v1049
        %vm1214 = vcmp.lt.s32.totalorder %v1050, 0
        %v1215 = vsub.s32 0, %v1050
        %v1216 = vsel %vm1214, %v1215, %v1050
        %vm1217 = vcmp.lt.s32.totalorder %v1051, 0
        %v1218 = vsub.s32 0, %v1051
        %v1219 = vsel %vm1217, %v1218, %v1051
        %vm1220 = vcmp.lt.s32.totalorder %v1052, 0
        %v1221 = vsub.s32 0, %v1052
        %v1222 = vsel %vm1220, %v1221, %v1052
        %vm1223 = vcmp.lt.s32.totalorder %v1053, 0
        %v1224 = vsub.s32 0, %v1053
        %v1225 = vsel %vm1223, %v1224, %v1053
        %vm1226 = vcmp.lt.s32.totalorder %v1054, 0
        %v1227 = vsub.s32 0, %v1054
        %v1228 = vsel %vm1226, %v1227, %v1054
        %vm1229 = vcmp.lt.s32.totalorder %v1055, 0
        %v1230 = vsub.s32 0, %v1055
        %v1231 = vsel %vm1229, %v1230, %v1055
        %vm1232 = vcmp.lt.s32.totalorder %v1056, 0
        %v1233 = vsub.s32 0, %v1056
        %v1234 = vsel %vm1232, %v1233, %v1056
        %vm1235 = vcmp.lt.s32.totalorder %v1057, 0
        %v1236 = vsub.s32 0, %v1057
        %v1237 = vsel %vm1235, %v1236, %v1057
        %vm1238 = vcmp.lt.s32.totalorder %v1058, 0
        %v1239 = vsub.s32 0, %v1058
        %v1240 = vsel %vm1238, %v1239, %v1058
        %vm1241 = vcmp.lt.s32.totalorder %v1059, 0
        %v1242 = vsub.s32 0, %v1059
        %v1243 = vsel %vm1241, %v1242, %v1059
        %vm1244 = vcmp.lt.s32.totalorder %v1060, 0
        %v1245 = vsub.s32 0, %v1060
        %v1246 = vsel %vm1244, %v1245, %v1060
        %vm1247 = vcmp.lt.s32.totalorder %v1061, 0
        %v1248 = vsub.s32 0, %v1061
        %v1249 = vsel %vm1247, %v1248, %v1061
        %vm1250 = vcmp.lt.s32.totalorder %v1062, 0
        %v1251 = vsub.s32 0, %v1062
        %v1252 = vsel %vm1250, %v1251, %v1062
        %vm1253 = vcmp.lt.s32.totalorder %v1063, 0
        %v1254 = vsub.s32 0, %v1063
        %v1255 = vsel %vm1253, %v1254, %v1063
        %v1256 = vsub.s32 %v964, %v998
        %v1257 = vsub.s32 %v964, %v999
        %v1258 = vsub.s32 %v965, %v998
        %v1259 = vsub.s32 %v965, %v999
        %v1260 = vsub.s32 %v966, %v998
        %v1261 = vsub.s32 %v966, %v999
        %v1262 = vsub.s32 %v967, %v998
        %v1263 = vsub.s32 %v967, %v999
        %v1264 = vsub.s32 %v968, %v998
        %v1265 = vsub.s32 %v968, %v999
        %v1266 = vsub.s32 %v969, %v998
        %v1267 = vsub.s32 %v969, %v999
        %v1268 = vsub.s32 %v970, %v998
        %v1269 = vsub.s32 %v970, %v999
        %v1270 = vsub.s32 %v971, %v998
        %v1271 = vsub.s32 %v971, %v999
        %v1272 = vsub.s32 %v972, %v998
        %v1273 = vsub.s32 %v972, %v999
        %v1274 = vsub.s32 %v973, %v998
        %v1275 = vsub.s32 %v973, %v999
        %v1276 = vsub.s32 %v974, %v998
        %v1277 = vsub.s32 %v974, %v999
        %v1278 = vsub.s32 %v975, %v998
        %v1279 = vsub.s32 %v975, %v999
        %v1280 = vsub.s32 %v976, %v998
        %v1281 = vsub.s32 %v976, %v999
        %v1282 = vsub.s32 %v977, %v998
        %v1283 = vsub.s32 %v977, %v999
        %v1284 = vsub.s32 %v978, %v998
        %v1285 = vsub.s32 %v978, %v999
        %v1286 = vsub.s32 %v979, %v998
        %v1287 = vsub.s32 %v979, %v999
        %v1288 = vsub.s32 %v980, %v998
        %v1289 = vsub.s32 %v980, %v999
        %v1290 = vsub.s32 %v981, %v998
        %v1291 = vsub.s32 %v981, %v999
        %v1292 = vsub.s32 %v982, %v998
        %v1293 = vsub.s32 %v982, %v999
        %v1294 = vsub.s32 %v983, %v998
        %v1295 = vsub.s32 %v983, %v999
        %v1296 = vsub.s32 %v984, %v998
        %v1297 = vsub.s32 %v984, %v999
        %v1298 = vsub.s32 %v985, %v998
        %v1299 = vsub.s32 %v985, %v999
        %v1300 = vsub.s32 %v986, %v998
        %v1301 = vsub.s32 %v986, %v999
        %v1302 = vsub.s32 %v987, %v998
        %v1303 = vsub.s32 %v987, %v999
        %v1304 = vsub.s32 %v988, %v998
        %v1305 = vsub.s32 %v988, %v999
        %v1306 = vsub.s32 %v989, %v998
        %v1307 = vsub.s32 %v989, %v999
        %v1308 = vsub.s32 %v990, %v998
        %v1309 = vsub.s32 %v990, %v999
        %v1310 = vsub.s32 %v991, %v998
        %v1311 = vsub.s32 %v991, %v999
        %v1312 = vsub.s32 %v992, %v998
        %v1313 = vsub.s32 %v992, %v999
        %v1314 = vsub.s32 %v993, %v998
        %v1315 = vsub.s32 %v993, %v999
        %v1316 = vsub.s32 %v994, %v998
        %v1317 = vsub.s32 %v994, %v999
        %v1318 = vsub.s32 %v995, %v998
        %v1319 = vsub.s32 %v995, %v999
        %vm1320 = vcmp.lt.s32.totalorder %v1256, 0
        %v1321 = vsub.s32 0, %v1256
        %v1322 = vsel %vm1320, %v1321, %v1256
        %vm1323 = vcmp.lt.s32.totalorder %v1257, 0
        %v1324 = vsub.s32 0, %v1257
        %v1325 = vsel %vm1323, %v1324, %v1257
        %vm1326 = vcmp.lt.s32.totalorder %v1258, 0
        %v1327 = vsub.s32 0, %v1258
        %v1328 = vsel %vm1326, %v1327, %v1258
        %vm1329 = vcmp.lt.s32.totalorder %v1259, 0
        %v1330 = vsub.s32 0, %v1259
        %v1331 = vsel %vm1329, %v1330, %v1259
        %vm1332 = vcmp.lt.s32.totalorder %v1260, 0
        %v1333 = vsub.s32 0, %v1260
        %v1334 = vsel %vm1332, %v1333, %v1260
        %vm1335 = vcmp.lt.s32.totalorder %v1261, 0
        %v1336 = vsub.s32 0, %v1261
        %v1337 = vsel %vm1335, %v1336, %v1261
        %vm1338 = vcmp.lt.s32.totalorder %v1262, 0
        %v1339 = vsub.s32 0, %v1262
        %v1340 = vsel %vm1338, %v1339, %v1262
        %vm1341 = vcmp.lt.s32.totalorder %v1263, 0
        %v1342 = vsub.s32 0, %v1263
        %v1343 = vsel %vm1341, %v1342, %v1263
        %vm1344 = vcmp.lt.s32.totalorder %v1264, 0
        %v1345 = vsub.s32 0, %v1264
        %v1346 = vsel %vm1344, %v1345, %v1264
        %vm1347 = vcmp.lt.s32.totalorder %v1265, 0
        %v1348 = vsub.s32 0, %v1265
        %v1349 = vsel %vm1347, %v1348, %v1265
        %vm1350 = vcmp.lt.s32.totalorder %v1266, 0
        %v1351 = vsub.s32 0, %v1266
        %v1352 = vsel %vm1350, %v1351, %v1266
        %vm1353 = vcmp.lt.s32.totalorder %v1267, 0
        %v1354 = vsub.s32 0, %v1267
        %v1355 = vsel %vm1353, %v1354, %v1267
        %vm1356 = vcmp.lt.s32.totalorder %v1268, 0
        %v1357 = vsub.s32 0, %v1268
        %v1358 = vsel %vm1356, %v1357, %v1268
        %vm1359 = vcmp.lt.s32.totalorder %v1269, 0
        %v1360 = vsub.s32 0, %v1269
        %v1361 = vsel %vm1359, %v1360, %v1269
        %vm1362 = vcmp.lt.s32.totalorder %v1270, 0
        %v1363 = vsub.s32 0, %v1270
        %v1364 = vsel %vm1362, %v1363, %v1270
        %vm1365 = vcmp.lt.s32.totalorder %v1271, 0
        %v1366 = vsub.s32 0, %v1271
        %v1367 = vsel %vm1365, %v1366, %v1271
        %vm1368 = vcmp.lt.s32.totalorder %v1272, 0
        %v1369 = vsub.s32 0, %v1272
        %v1370 = vsel %vm1368, %v1369, %v1272
        %vm1371 = vcmp.lt.s32.totalorder %v1273, 0
        %v1372 = vsub.s32 0, %v1273
        %v1373 = vsel %vm1371, %v1372, %v1273
        %vm1374 = vcmp.lt.s32.totalorder %v1274, 0
        %v1375 = vsub.s32 0, %v1274
        %v1376 = vsel %vm1374, %v1375, %v1274
        %vm1377 = vcmp.lt.s32.totalorder %v1275, 0
        %v1378 = vsub.s32 0, %v1275
        %v1379 = vsel %vm1377, %v1378, %v1275
        %vm1380 = vcmp.lt.s32.totalorder %v1276, 0
        %v1381 = vsub.s32 0, %v1276
        %v1382 = vsel %vm1380, %v1381, %v1276
        %vm1383 = vcmp.lt.s32.totalorder %v1277, 0
        %v1384 = vsub.s32 0, %v1277
        %v1385 = vsel %vm1383, %v1384, %v1277
        %vm1386 = vcmp.lt.s32.totalorder %v1278, 0
        %v1387 = vsub.s32 0, %v1278
        %v1388 = vsel %vm1386, %v1387, %v1278
        %vm1389 = vcmp.lt.s32.totalorder %v1279, 0
        %v1390 = vsub.s32 0, %v1279
        %v1391 = vsel %vm1389, %v1390, %v1279
        %vm1392 = vcmp.lt.s32.totalorder %v1280, 0
        %v1393 = vsub.s32 0, %v1280
        %v1394 = vsel %vm1392, %v1393, %v1280
        %vm1395 = vcmp.lt.s32.totalorder %v1281, 0
        %v1396 = vsub.s32 0, %v1281
        %v1397 = vsel %vm1395, %v1396, %v1281
        %vm1398 = vcmp.lt.s32.totalorder %v1282, 0
        %v1399 = vsub.s32 0, %v1282
        %v1400 = vsel %vm1398, %v1399, %v1282
        %vm1401 = vcmp.lt.s32.totalorder %v1283, 0
        %v1402 = vsub.s32 0, %v1283
        %v1403 = vsel %vm1401, %v1402, %v1283
        %vm1404 = vcmp.lt.s32.totalorder %v1284, 0
        %v1405 = vsub.s32 0, %v1284
        %v1406 = vsel %vm1404, %v1405, %v1284
        %vm1407 = vcmp.lt.s32.totalorder %v1285, 0
        %v1408 = vsub.s32 0, %v1285
        %v1409 = vsel %vm1407, %v1408, %v1285
        %vm1410 = vcmp.lt.s32.totalorder %v1286, 0
        %v1411 = vsub.s32 0, %v1286
        %v1412 = vsel %vm1410, %v1411, %v1286
        %vm1413 = vcmp.lt.s32.totalorder %v1287, 0
        %v1414 = vsub.s32 0, %v1287
        %v1415 = vsel %vm1413, %v1414, %v1287
        %vm1416 = vcmp.lt.s32.totalorder %v1288, 0
        %v1417 = vsub.s32 0, %v1288
        %v1418 = vsel %vm1416, %v1417, %v1288
        %vm1419 = vcmp.lt.s32.totalorder %v1289, 0
        %v1420 = vsub.s32 0, %v1289
        %v1421 = vsel %vm1419, %v1420, %v1289
        %vm1422 = vcmp.lt.s32.totalorder %v1290, 0
        %v1423 = vsub.s32 0, %v1290
        %v1424 = vsel %vm1422, %v1423, %v1290
        %vm1425 = vcmp.lt.s32.totalorder %v1291, 0
        %v1426 = vsub.s32 0, %v1291
        %v1427 = vsel %vm1425, %v1426, %v1291
        %vm1428 = vcmp.lt.s32.totalorder %v1292, 0
        %v1429 = vsub.s32 0, %v1292
        %v1430 = vsel %vm1428, %v1429, %v1292
        %vm1431 = vcmp.lt.s32.totalorder %v1293, 0
        %v1432 = vsub.s32 0, %v1293
        %v1433 = vsel %vm1431, %v1432, %v1293
        %vm1434 = vcmp.lt.s32.totalorder %v1294, 0
        %v1435 = vsub.s32 0, %v1294
        %v1436 = vsel %vm1434, %v1435, %v1294
        %vm1437 = vcmp.lt.s32.totalorder %v1295, 0
        %v1438 = vsub.s32 0, %v1295
        %v1439 = vsel %vm1437, %v1438, %v1295
        %vm1440 = vcmp.lt.s32.totalorder %v1296, 0
        %v1441 = vsub.s32 0, %v1296
        %v1442 = vsel %vm1440, %v1441, %v1296
        %vm1443 = vcmp.lt.s32.totalorder %v1297, 0
        %v1444 = vsub.s32 0, %v1297
        %v1445 = vsel %vm1443, %v1444, %v1297
        %vm1446 = vcmp.lt.s32.totalorder %v1298, 0
        %v1447 = vsub.s32 0, %v1298
        %v1448 = vsel %vm1446, %v1447, %v1298
        %vm1449 = vcmp.lt.s32.totalorder %v1299, 0
        %v1450 = vsub.s32 0, %v1299
        %v1451 = vsel %vm1449, %v1450, %v1299
        %vm1452 = vcmp.lt.s32.totalorder %v1300, 0
        %v1453 = vsub.s32 0, %v1300
        %v1454 = vsel %vm1452, %v1453, %v1300
        %vm1455 = vcmp.lt.s32.totalorder %v1301, 0
        %v1456 = vsub.s32 0, %v1301
        %v1457 = vsel %vm1455, %v1456, %v1301
        %vm1458 = vcmp.lt.s32.totalorder %v1302, 0
        %v1459 = vsub.s32 0, %v1302
        %v1460 = vsel %vm1458, %v1459, %v1302
        %vm1461 = vcmp.lt.s32.totalorder %v1303, 0
        %v1462 = vsub.s32 0, %v1303
        %v1463 = vsel %vm1461, %v1462, %v1303
        %vm1464 = vcmp.lt.s32.totalorder %v1304, 0
        %v1465 = vsub.s32 0, %v1304
        %v1466 = vsel %vm1464, %v1465, %v1304
        %vm1467 = vcmp.lt.s32.totalorder %v1305, 0
        %v1468 = vsub.s32 0, %v1305
        %v1469 = vsel %vm1467, %v1468, %v1305
        %vm1470 = vcmp.lt.s32.totalorder %v1306, 0
        %v1471 = vsub.s32 0, %v1306
        %v1472 = vsel %vm1470, %v1471, %v1306
        %vm1473 = vcmp.lt.s32.totalorder %v1307, 0
        %v1474 = vsub.s32 0, %v1307
        %v1475 = vsel %vm1473, %v1474, %v1307
        %vm1476 = vcmp.lt.s32.totalorder %v1308, 0
        %v1477 = vsub.s32 0, %v1308
        %v1478 = vsel %vm1476, %v1477, %v1308
        %vm1479 = vcmp.lt.s32.totalorder %v1309, 0
        %v1480 = vsub.s32 0, %v1309
        %v1481 = vsel %vm1479, %v1480, %v1309
        %vm1482 = vcmp.lt.s32.totalorder %v1310, 0
        %v1483 = vsub.s32 0, %v1310
        %v1484 = vsel %vm1482, %v1483, %v1310
        %vm1485 = vcmp.lt.s32.totalorder %v1311, 0
        %v1486 = vsub.s32 0, %v1311
        %v1487 = vsel %vm1485, %v1486, %v1311
        %vm1488 = vcmp.lt.s32.totalorder %v1312, 0
        %v1489 = vsub.s32 0, %v1312
        %v1490 = vsel %vm1488, %v1489, %v1312
        %vm1491 = vcmp.lt.s32.totalorder %v1313, 0
        %v1492 = vsub.s32 0, %v1313
        %v1493 = vsel %vm1491, %v1492, %v1313
        %vm1494 = vcmp.lt.s32.totalorder %v1314, 0
        %v1495 = vsub.s32 0, %v1314
        %v1496 = vsel %vm1494, %v1495, %v1314
        %vm1497 = vcmp.lt.s32.totalorder %v1315, 0
        %v1498 = vsub.s32 0, %v1315
        %v1499 = vsel %vm1497, %v1498, %v1315
        %vm1500 = vcmp.lt.s32.totalorder %v1316, 0
        %v1501 = vsub.s32 0, %v1316
        %v1502 = vsel %vm1500, %v1501, %v1316
        %vm1503 = vcmp.lt.s32.totalorder %v1317, 0
        %v1504 = vsub.s32 0, %v1317
        %v1505 = vsel %vm1503, %v1504, %v1317
        %vm1506 = vcmp.lt.s32.totalorder %v1318, 0
        %v1507 = vsub.s32 0, %v1318
        %v1508 = vsel %vm1506, %v1507, %v1318
        %vm1509 = vcmp.lt.s32.totalorder %v1319, 0
        %v1510 = vsub.s32 0, %v1319
        %v1511 = vsel %vm1509, %v1510, %v1319
        %v1512 = vadd.s32 %v1066, %v1322
        %v1513 = vadd.s32 %v1069, %v1325
        %v1514 = vadd.s32 %v1072, %v1328
        %v1515 = vadd.s32 %v1075, %v1331
        %v1516 = vadd.s32 %v1078, %v1334
        %v1517 = vadd.s32 %v1081, %v1337
        %v1518 = vadd.s32 %v1084, %v1340
        %v1519 = vadd.s32 %v1087, %v1343
        %v1520 = vadd.s32 %v1090, %v1346
        %v1521 = vadd.s32 %v1093, %v1349
        %v1522 = vadd.s32 %v1096, %v1352
        %v1523 = vadd.s32 %v1099, %v1355
        %v1524 = vadd.s32 %v1102, %v1358
        %v1525 = vadd.s32 %v1105, %v1361
        %v1526 = vadd.s32 %v1108, %v1364
        %v1527 = vadd.s32 %v1111, %v1367
        %v1528 = vadd.s32 %v1114, %v1370
        %v1529 = vadd.s32 %v1117, %v1373
        %v1530 = vadd.s32 %v1120, %v1376
        %v1531 = vadd.s32 %v1123, %v1379
        %v1532 = vadd.s32 %v1126, %v1382
        %v1533 = vadd.s32 %v1129, %v1385
        %v1534 = vadd.s32 %v1132, %v1388
        %v1535 = vadd.s32 %v1135, %v1391
        %v1536 = vadd.s32 %v1138, %v1394
        %v1537 = vadd.s32 %v1141, %v1397
        %v1538 = vadd.s32 %v1144, %v1400
        %v1539 = vadd.s32 %v1147, %v1403
        %v1540 = vadd.s32 %v1150, %v1406
        %v1541 = vadd.s32 %v1153, %v1409
        %v1542 = vadd.s32 %v1156, %v1412
        %v1543 = vadd.s32 %v1159, %v1415
        %v1544 = vadd.s32 %v1162, %v1418
        %v1545 = vadd.s32 %v1165, %v1421
        %v1546 = vadd.s32 %v1168, %v1424
        %v1547 = vadd.s32 %v1171, %v1427
        %v1548 = vadd.s32 %v1174, %v1430
        %v1549 = vadd.s32 %v1177, %v1433
        %v1550 = vadd.s32 %v1180, %v1436
        %v1551 = vadd.s32 %v1183, %v1439
        %v1552 = vadd.s32 %v1186, %v1442
        %v1553 = vadd.s32 %v1189, %v1445
        %v1554 = vadd.s32 %v1192, %v1448
        %v1555 = vadd.s32 %v1195, %v1451
        %v1556 = vadd.s32 %v1198, %v1454
        %v1557 = vadd.s32 %v1201, %v1457
        %v1558 = vadd.s32 %v1204, %v1460
        %v1559 = vadd.s32 %v1207, %v1463
        %v1560 = vadd.s32 %v1210, %v1466
        %v1561 = vadd.s32 %v1213, %v1469
        %v1562 = vadd.s32 %v1216, %v1472
        %v1563 = vadd.s32 %v1219, %v1475
        %v1564 = vadd.s32 %v1222, %v1478
        %v1565 = vadd.s32 %v1225, %v1481
        %v1566 = vadd.s32 %v1228, %v1484
        %v1567 = vadd.s32 %v1231, %v1487
        %v1568 = vadd.s32 %v1234, %v1490
        %v1569 = vadd.s32 %v1237, %v1493
        %v1570 = vadd.s32 %v1240, %v1496
        %v1571 = vadd.s32 %v1243, %v1499
        %v1572 = vadd.s32 %v1246, %v1502
        %v1573 = vadd.s32 %v1249, %v1505
        %v1574 = vadd.s32 %v1252, %v1508
        %v1575 = vadd.s32 %v1255, %v1511
        %v1576 = vcvt.s32.f32 %v1512
        %v1577 = vcvt.s32.f32 %v1513
        %v1578 = vcvt.s32.f32 %v1514
        %v1579 = vcvt.s32.f32 %v1515
        %v1580 = vcvt.s32.f32 %v1516
        %v1581 = vcvt.s32.f32 %v1517
        %v1582 = vcvt.s32.f32 %v1518
        %v1583 = vcvt.s32.f32 %v1519
        %v1584 = vcvt.s32.f32 %v1520
        %v1585 = vcvt.s32.f32 %v1521
        %v1586 = vcvt.s32.f32 %v1522
        %v1587 = vcvt.s32.f32 %v1523
        %v1588 = vcvt.s32.f32 %v1524
        %v1589 = vcvt.s32.f32 %v1525
        %v1590 = vcvt.s32.f32 %v1526
        %v1591 = vcvt.s32.f32 %v1527
        %v1592 = vcvt.s32.f32 %v1528
        %v1593 = vcvt.s32.f32 %v1529
        %v1594 = vcvt.s32.f32 %v1530
        %v1595 = vcvt.s32.f32 %v1531
        %v1596 = vcvt.s32.f32 %v1532
        %v1597 = vcvt.s32.f32 %v1533
        %v1598 = vcvt.s32.f32 %v1534
        %v1599 = vcvt.s32.f32 %v1535
        %v1600 = vcvt.s32.f32 %v1536
        %v1601 = vcvt.s32.f32 %v1537
        %v1602 = vcvt.s32.f32 %v1538
        %v1603 = vcvt.s32.f32 %v1539
        %v1604 = vcvt.s32.f32 %v1540
        %v1605 = vcvt.s32.f32 %v1541
        %v1606 = vcvt.s32.f32 %v1542
        %v1607 = vcvt.s32.f32 %v1543
        %v1608 = vcvt.s32.f32 %v1544
        %v1609 = vcvt.s32.f32 %v1545
        %v1610 = vcvt.s32.f32 %v1546
        %v1611 = vcvt.s32.f32 %v1547
        %v1612 = vcvt.s32.f32 %v1548
        %v1613 = vcvt.s32.f32 %v1549
        %v1614 = vcvt.s32.f32 %v1550
        %v1615 = vcvt.s32.f32 %v1551
        %v1616 = vcvt.s32.f32 %v1552
        %v1617 = vcvt.s32.f32 %v1553
        %v1618 = vcvt.s32.f32 %v1554
        %v1619 = vcvt.s32.f32 %v1555
        %v1620 = vcvt.s32.f32 %v1556
        %v1621 = vcvt.s32.f32 %v1557
        %v1622 = vcvt.s32.f32 %v1558
        %v1623 = vcvt.s32.f32 %v1559
        %v1624 = vcvt.s32.f32 %v1560
        %v1625 = vcvt.s32.f32 %v1561
        %v1626 = vcvt.s32.f32 %v1562
        %v1627 = vcvt.s32.f32 %v1563
        %v1628 = vcvt.s32.f32 %v1564
        %v1629 = vcvt.s32.f32 %v1565
        %v1630 = vcvt.s32.f32 %v1566
        %v1631 = vcvt.s32.f32 %v1567
        %v1632 = vcvt.s32.f32 %v1568
        %v1633 = vcvt.s32.f32 %v1569
        %v1634 = vcvt.s32.f32 %v1570
        %v1635 = vcvt.s32.f32 %v1571
        %v1636 = vcvt.s32.f32 %v1572
        %v1637 = vcvt.s32.f32 %v1573
        %v1638 = vcvt.s32.f32 %v1574
        %v1639 = vcvt.s32.f32 %v1575
        %s1640 = sld [smem:[#allocation2 + %s27]]
        %v1641 = vstv %s1640
        %v1642 = vmul.f32 %v1576, %v1641
        %v1643 = vmul.f32 %v1577, %v1641
        %v1644 = vmul.f32 %v1578, %v1641
        %v1645 = vmul.f32 %v1579, %v1641
        %v1646 = vmul.f32 %v1580, %v1641
        %v1647 = vmul.f32 %v1581, %v1641
        %v1648 = vmul.f32 %v1582, %v1641
        %v1649 = vmul.f32 %v1583, %v1641
        %v1650 = vmul.f32 %v1584, %v1641
        %v1651 = vmul.f32 %v1585, %v1641
        %v1652 = vmul.f32 %v1586, %v1641
        %v1653 = vmul.f32 %v1587, %v1641
        %v1654 = vmul.f32 %v1588, %v1641
        %v1655 = vmul.f32 %v1589, %v1641
        %v1656 = vmul.f32 %v1590, %v1641
        %v1657 = vmul.f32 %v1591, %v1641
        %v1658 = vmul.f32 %v1592, %v1641
        %v1659 = vmul.f32 %v1593, %v1641
        %v1660 = vmul.f32 %v1594, %v1641
        %v1661 = vmul.f32 %v1595, %v1641
        %v1662 = vmul.f32 %v1596, %v1641
        %v1663 = vmul.f32 %v1597, %v1641
        %v1664 = vmul.f32 %v1598, %v1641
        %v1665 = vmul.f32 %v1599, %v1641
        %v1666 = vmul.f32 %v1600, %v1641
        %v1667 = vmul.f32 %v1601, %v1641
        %v1668 = vmul.f32 %v1602, %v1641
        %v1669 = vmul.f32 %v1603, %v1641
        %v1670 = vmul.f32 %v1604, %v1641
        %v1671 = vmul.f32 %v1605, %v1641
        %v1672 = vmul.f32 %v1606, %v1641
        %v1673 = vmul.f32 %v1607, %v1641
        %v1674 = vmul.f32 %v1608, %v1641
        %v1675 = vmul.f32 %v1609, %v1641
        %v1676 = vmul.f32 %v1610, %v1641
        %v1677 = vmul.f32 %v1611, %v1641
        %v1678 = vmul.f32 %v1612, %v1641
        %v1679 = vmul.f32 %v1613, %v1641
        %v1680 = vmul.f32 %v1614, %v1641
        %v1681 = vmul.f32 %v1615, %v1641
        %v1682 = vmul.f32 %v1616, %v1641
        %v1683 = vmul.f32 %v1617, %v1641
        %v1684 = vmul.f32 %v1618, %v1641
        %v1685 = vmul.f32 %v1619, %v1641
        %v1686 = vmul.f32 %v1620, %v1641
        %v1687 = vmul.f32 %v1621, %v1641
        %v1688 = vmul.f32 %v1622, %v1641
        %v1689 = vmul.f32 %v1623, %v1641
        %v1690 = vmul.f32 %v1624, %v1641
        %v1691 = vmul.f32 %v1625, %v1641
        %v1692 = vmul.f32 %v1626, %v1641
        %v1693 = vmul.f32 %v1627, %v1641
        %v1694 = vmul.f32 %v1628, %v1641
        %v1695 = vmul.f32 %v1629, %v1641
        %v1696 = vmul.f32 %v1630, %v1641
        %v1697 = vmul.f32 %v1631, %v1641
        %v1698 = vmul.f32 %v1632, %v1641
        %v1699 = vmul.f32 %v1633, %v1641
        %v1700 = vmul.f32 %v1634, %v1641
        %v1701 = vmul.f32 %v1635, %v1641
        %v1702 = vmul.f32 %v1636, %v1641
        %v1703 = vmul.f32 %v1637, %v1641
        %v1704 = vmul.f32 %v1638, %v1641
        %v1705 = vmul.f32 %v1639, %v1641
        %1706 = vst [vmem:[%s221] sm:$0xff] %v1642
        %1707 = vst [vmem:[%s221 + $0x8] sm:$0xff] %v1643
        %1708 = vst [vmem:[%s221 + $0x10] sm:$0xff] %v1644
        %1709 = vst [vmem:[%s221 + $0x18] sm:$0xff] %v1645
        %1710 = vst [vmem:[%s221 + $0x20] sm:$0xff] %v1646
        %1711 = vst [vmem:[%s221 + $0x28] sm:$0xff] %v1647
        %1712 = vst [vmem:[%s221 + $0x30] sm:$0xff] %v1648
        %1713 = vst [vmem:[%s221 + $0x38] sm:$0xff] %v1649
        %1714 = vst [vmem:[%s221 + $0x40] sm:$0xff] %v1650
        %1715 = vst [vmem:[%s221 + $0x48] sm:$0xff] %v1651
        %1716 = vst [vmem:[%s221 + $0x50] sm:$0xff] %v1652
        %1717 = vst [vmem:[%s221 + $0x58] sm:$0xff] %v1653
        %1718 = vst [vmem:[%s221 + $0x60] sm:$0xff] %v1654
        %1719 = vst [vmem:[%s221 + $0x68] sm:$0xff] %v1655
        %1720 = vst [vmem:[%s221 + $0x70] sm:$0xff] %v1656
        %1721 = vst [vmem:[%s221 + $0x78] sm:$0xff] %v1657
        %1722 = vst [vmem:[%s221 + $0x80] sm:$0xff] %v1658
        %1723 = vst [vmem:[%s221 + $0x88] sm:$0xff] %v1659
        %1724 = vst [vmem:[%s221 + $0x90] sm:$0xff] %v1660
        %1725 = vst [vmem:[%s221 + $0x98] sm:$0xff] %v1661
        %1726 = vst [vmem:[%s221 + $0xa0] sm:$0xff] %v1662
        %1727 = vst [vmem:[%s221 + $0xa8] sm:$0xff] %v1663
        %1728 = vst [vmem:[%s221 + $0xb0] sm:$0xff] %v1664
        %1729 = vst [vmem:[%s221 + $0xb8] sm:$0xff] %v1665
        %1730 = vst [vmem:[%s221 + $0xc0] sm:$0xff] %v1666
        %1731 = vst [vmem:[%s221 + $0xc8] sm:$0xff] %v1667
        %1732 = vst [vmem:[%s221 + $0xd0] sm:$0xff] %v1668
        %1733 = vst [vmem:[%s221 + $0xd8] sm:$0xff] %v1669
        %1734 = vst [vmem:[%s221 + $0xe0] sm:$0xff] %v1670
        %1735 = vst [vmem:[%s221 + $0xe8] sm:$0xff] %v1671
        %1736 = vst [vmem:[%s221 + $0xf0] sm:$0xff] %v1672
        %1737 = vst [vmem:[%s221 + $0xf8] sm:$0xff] %v1673
        %1738 = vst [vmem:[%s221 + $0x100] sm:$0xff] %v1674
        %1739 = vst [vmem:[%s221 + $0x108] sm:$0xff] %v1675
        %1740 = vst [vmem:[%s221 + $0x110] sm:$0xff] %v1676
        %1741 = vst [vmem:[%s221 + $0x118] sm:$0xff] %v1677
        %1742 = vst [vmem:[%s221 + $0x120] sm:$0xff] %v1678
        %1743 = vst [vmem:[%s221 + $0x128] sm:$0xff] %v1679
        %1744 = vst [vmem:[%s221 + $0x130] sm:$0xff] %v1680
        %1745 = vst [vmem:[%s221 + $0x138] sm:$0xff] %v1681
        %1746 = vst [vmem:[%s221 + $0x140] sm:$0xff] %v1682
        %1747 = vst [vmem:[%s221 + $0x148] sm:$0xff] %v1683
        %1748 = vst [vmem:[%s221 + $0x150] sm:$0xff] %v1684
        %1749 = vst [vmem:[%s221 + $0x158] sm:$0xff] %v1685
        %1750 = vst [vmem:[%s221 + $0x160] sm:$0xff] %v1686
        %1751 = vst [vmem:[%s221 + $0x168] sm:$0xff] %v1687
        %1752 = vst [vmem:[%s221 + $0x170] sm:$0xff] %v1688
        %1753 = vst [vmem:[%s221 + $0x178] sm:$0xff] %v1689
        %1754 = vst [vmem:[%s221 + $0x180] sm:$0xff] %v1690
        %1755 = vst [vmem:[%s221 + $0x188] sm:$0xff] %v1691
        %1756 = vst [vmem:[%s221 + $0x190] sm:$0xff] %v1692
        %1757 = vst [vmem:[%s221 + $0x198] sm:$0xff] %v1693
        %1758 = vst [vmem:[%s221 + $0x1a0] sm:$0xff] %v1694
        %1759 = vst [vmem:[%s221 + $0x1a8] sm:$0xff] %v1695
        %1760 = vst [vmem:[%s221 + $0x1b0] sm:$0xff] %v1696
        %1761 = vst [vmem:[%s221 + $0x1b8] sm:$0xff] %v1697
        %1762 = vst [vmem:[%s221 + $0x1c0] sm:$0xff] %v1698
        %1763 = vst [vmem:[%s221 + $0x1c8] sm:$0xff] %v1699
        %1764 = vst [vmem:[%s221 + $0x1d0] sm:$0xff] %v1700
        %1765 = vst [vmem:[%s221 + $0x1d8] sm:$0xff] %v1701
        %1766 = vst [vmem:[%s221 + $0x1e0] sm:$0xff] %v1702
        %1767 = vst [vmem:[%s221 + $0x1e8] sm:$0xff] %v1703
        %1768 = vst [vmem:[%s221 + $0x1f0] sm:$0xff] %v1704
        %1769 = vst [vmem:[%s221 + $0x1f8] sm:$0xff] %v1705
        %s1770 = sand.u32 %s85, 1
        %s1771 = scalar_lea.sflag [#allocation3], %s1770
        %s1772 = sand.u32 %s85, 1
        %s1773 = smul.addr %s1772, 16
        %s1774 = scalar_lea.vmem [#allocation5], %s1773
        %s1775 = sand.u32 %s23, 1
        %s1776 = scalar_lea.sflag [#allocation7], %s1775
        %s1777 = sand.u32 %s111, 1
        %s1778 = smul.addr %s1777, 16
        %s1779 = scalar_lea.vmem [#allocation6], %s1778
        %s1780 = sand.u32 %s23, 1
        %s1781 = scalar_lea.sflag [#allocation7], %s1780
        %s1782 = sand.u32 %s139, 1
        %s1783 = smul.addr %s1782, 512
        %s1784 = scalar_lea.vmem [#allocation8], %s1783
        // Predicated region
        $region37: #{tpu_custom_call.1} parent=27 // pred_check
          %p1785 = pneg %p95
        $region38: #{tpu_custom_call.1} parent=27 // pred_check_branch
          %1787 = sbr.rel (%p1785) target = $region40
        $region39: #{tpu_custom_call.1} parent=27 // pred_region
          %1789 = vsyncadd %s1771, 0
          %s1790 = smul.addr %s27, 2
          %s1791 = smul.addr %s1790, 8
          %s1792 = scalar_lea.hbm %s2, %s1791
          %s1794 = sshll.u32 %s1774, 4
          %s1795 = int_to_ptr.vmem [resolvable:$true] %s1794
          %s1796 = sshll.u32 %s1792, 4
          %s1797 = int_to_ptr.hbm [resolvable:$true] %s1796
          %1799 = dma.vmem_to_hbm [thread:$0]  %s1795, 256, %s1797, %s1771
        $region40: #{tpu_custom_call.1} parent=27 // pred_fallthru
          _
        // Predicated region
        $region41: #{tpu_custom_call.1} parent=27 // pred_check
          %p1800 = pneg %p121
        $region42: #{tpu_custom_call.1} parent=27 // pred_check_branch
          %1802 = sbr.rel (%p1800) target = $region44
        $region43: #{tpu_custom_call.1} parent=27 // pred_region
          %1804 = vsyncadd %s1776, 0
          %s1805 = smul.addr %s27, 2
          %s1806 = smul.addr %s1805, 8
          %s1807 = scalar_lea.hbm %s3, %s1806
          %s1809 = sshll.u32 %s1779, 4
          %s1810 = int_to_ptr.vmem [resolvable:$true] %s1809
          %s1811 = sshll.u32 %s1807, 4
          %s1812 = int_to_ptr.hbm [resolvable:$true] %s1811
          %1814 = dma.vmem_to_hbm [thread:$0]  %s1810, 256, %s1812, %s1776
        $region44: #{tpu_custom_call.1} parent=27 // pred_fallthru
          _
        // Predicated region
        $region45: #{tpu_custom_call.1} parent=27 // pred_check
          %p1815 = pneg %p149
        $region46: #{tpu_custom_call.1} parent=27 // pred_check_branch
          %1817 = sbr.rel (%p1815) target = $region48
        $region47: #{tpu_custom_call.1} parent=27 // pred_region
          %s1818 = smul.u32 32, %s28
          %1820 = vsyncadd %s1781, 0
          %s1821 = smul.addr %s1818, 2
          %s1822 = smul.addr %s27, 64
          %s1823 = sadd.s32 %s1821, %s1822
          %s1824 = smul.addr %s1823, 8
          %s1825 = scalar_lea.hbm %s4, %s1824
          %s1826 = sshll.u32 %s1784, 4
          %s1827 = int_to_ptr.vmem [resolvable:$true] %s1826
          %s1828 = sshll.u32 %s1825, 4
          %s1829 = int_to_ptr.hbm [resolvable:$true] %s1828
          %1834 = dma.vmem_to_hbm [thread:$0]  %s1827, 8192, %s1829, %s1781, 256, 256, 16
        $region48: #{tpu_custom_call.1} parent=27 // pred_fallthru
          _
      $region28: #{tpu_custom_call.1} parent=5 // pred_fallthru
        _
      %p1835 = scmp.le.s32.totalorder 2, %s18
      // Predicated region
      $region49: #{tpu_custom_call.1} parent=5 // pred_check
        %p1836 = pneg %p1835
      $region50: #{tpu_custom_call.1} parent=5 // pred_check_branch
        %1838 = sbr.rel (%p1836) target = $region52
      $region51: #{tpu_custom_call.1} parent=5 // pred_region
        %s1839 = ssub.s32 %s18, 2
        // Predicated region
        $region53: #{tpu_custom_call.1} parent=51 // pred_check
          %p1840 = pneg %p101
        $region54: #{tpu_custom_call.1} parent=51 // pred_check_branch
          %1842 = sbr.rel (%p1840) target = $region56
        $region55: #{tpu_custom_call.1} parent=51 // pred_region
          %s1843 = sand.u32 %s86, 1
          %s1844 = scalar_lea.sflag [#allocation3], %s1843
          %s1845 = sand.u32 %s86, 1
          %s1846 = smul.addr %s1845, 16
          %s1847 = scalar_lea.vmem [#allocation5], %s1846
          %1849 = dma.done %s1844, 256
        $region56: #{tpu_custom_call.1} parent=51 // pred_fallthru
          _
        // Predicated region
        $region57: #{tpu_custom_call.1} parent=51 // pred_check
          %p1850 = pneg %p127
        $region58: #{tpu_custom_call.1} parent=51 // pred_check_branch
          %1852 = sbr.rel (%p1850) target = $region60
        $region59: #{tpu_custom_call.1} parent=51 // pred_region
          %s1853 = sand.u32 %s24, 1
          %s1854 = scalar_lea.sflag [#allocation7], %s1853
          %s1855 = sand.u32 %s112, 1
          %s1856 = smul.addr %s1855, 16
          %s1857 = scalar_lea.vmem [#allocation6], %s1856
          %1859 = dma.done %s1854, 256
        $region60: #{tpu_custom_call.1} parent=51 // pred_fallthru
          _
        // Predicated region
        $region61: #{tpu_custom_call.1} parent=51 // pred_check
          %p1860 = pneg %p155
        $region62: #{tpu_custom_call.1} parent=51 // pred_check_branch
          %1862 = sbr.rel (%p1860) target = $region64
        $region63: #{tpu_custom_call.1} parent=51 // pred_region
          %s1863 = sand.u32 %s24, 1
          %s1864 = scalar_lea.sflag [#allocation7], %s1863
          %s1865 = sand.u32 %s140, 1
          %s1866 = smul.addr %s1865, 512
          %s1867 = scalar_lea.vmem [#allocation8], %s1866
          %1869 = dma.done %s1864, 8192
        $region64: #{tpu_custom_call.1} parent=51 // pred_fallthru
          _
      $region52: #{tpu_custom_call.1} parent=5 // pred_fallthru
        _
    $region6: #{tpu_custom_call.1} parent=1 // loop_footer
      %s22 = sadd.s32 1, %s18
    $region7: #{tpu_custom_call.1} parent=1 // loop_footer_branch
      %17 = sbr.rel target = $region3
    $region8: #{tpu_custom_call.1} parent=1 // loop_exit
      _
    %1870 = vsyncpa [#allocation3], 1
    %s1871 = scalar_lea.sflag [#allocation3], 1
    %1872 = vsyncpa %s1871, 1
    %1873 = vsyncpa [#allocation7], 1
    %s1874 = scalar_lea.sflag [#allocation7], 1
    %1875 = vsyncpa %s1874, 1
    %1876 = vsyncpa [#allocation4], 1
    %s1877 = scalar_lea.sflag [#allocation4], 1
    %1878 = vsyncpa %s1877, 1

</llo_original>
